<compile_context>
chip_gen: v7x
topology: tpu7x:2x2x1
jax: 0.10.0
libtpu: 0.0.40
codegen_flags: <defaults>
</compile_context>

<pallas_src>
import math
import numpy as np
import jax
import jax.numpy as jnp
from jax.experimental import pallas as pl
from jax.experimental.pallas import tpu as pltpu

# ----------------------------- configuration -------------------------------
WINDOW_LENGTH = 32
HOP_FRACTION = 0.5
HSIZE = int(HOP_FRACTION * WINDOW_LENGTH)
HIDDEN_SIZE = 64
NUM_GRU_LEVELS = 2           # kernel below is written for exactly 2 layers
WAVELET_SIZE = 4
NUM_WAVELET_LAYERS = 3

BATCH = 2
SIGNAL_LEN = 64

NF_BLOCK_MAX = 1024          # cap on the per-grid-step frame tile (VMEM is not binding)


def _round_up(x, m):
    return ((x + m - 1) // m) * m


# ----------------------- wavelet transform matrix --------------------------
# TODO(synk): Wavelet_DWT is undefined in the reference; implemented here as a
# deterministic orthogonal multi-level DWT matrix (Haar filters zero-padded to
# `wavelet_size`), applied per-frame as a matmul (perfect reconstruction).
def build_dwt_matrix(W, wavelet_size, num_layers):
    h = np.zeros(wavelet_size, dtype=np.float64)
    g = np.zeros(wavelet_size, dtype=np.float64)
    h[0] = h[1] = 1.0 / math.sqrt(2.0)
    g[0], g[1] = 1.0 / math.sqrt(2.0), -1.0 / math.sqrt(2.0)
    T = np.eye(W)
    n = W
    for _ in range(num_layers):
        if n < 2:
            break
        half = n // 2
        M = np.zeros((n, n))
        for k in range(half):
            for t in range(wavelet_size):
                idx = (2 * k + t) % n
                M[k, idx] += h[t]
                M[half + k, idx] += g[t]
        A = np.eye(W)
        A[:n, :n] = M
        T = A @ T
        n = half
    return T.astype(np.float32)  # orthogonal: reconstruction = T.T


# ------------------------------ fused kernel --------------------------------
def _fused_kernel(frames_ref, dec_ref,
                  g0_wih_ref, g0_whh_ref, g0_bi_ref, g0_bhn_ref,
                  g1_wih_ref, g1_whh_ref, g1_bi_ref, g1_bhn_ref,
                  pac_ref, pbw_ref, pbb_ref, pcb_ref,
                  out_ref):
    B, NF, W = frames_ref.shape      # B = GRU sequence length, NF = frames (mult of 8)
    H = g0_whh_ref.shape[0]
    G = 4 * W                        # packed output lane width (= 128)

    dec = dec_ref[...]               # window already folded in (diag(wind) @ T^T)
    w0ih, w0hh = g0_wih_ref[...], g0_whh_ref[...]
    w1ih, w1hh = g1_wih_ref[...], g1_whh_ref[...]
    pac, pbw = pac_ref[...], pbw_ref[...]

    # Hoist every (1, X) -> (NF, X) broadcast out of the unrolled recurrence.
    b0i = jnp.broadcast_to(g0_bi_ref[...], (NF, 3 * H))
    b1i = jnp.broadcast_to(g1_bi_ref[...], (NF, 3 * H))
    bhn0 = jnp.broadcast_to(g0_bhn_ref[...], (NF, H))
    bhn1 = jnp.broadcast_to(g1_bhn_ref[...], (NF, H))
    pbb = jnp.broadcast_to(pbb_ref[...], (NF, G))
    pcb = jnp.broadcast_to(pcb_ref[...], (NF, G))

    def gru_cell(gx, h, whh, bhn):
        # one fused N = 3H = 192 hidden matmul per step (instead of 3 x N=64)
        gh = jnp.dot(h, whh, preferred_element_type=jnp.float32)
        r = jax.nn.sigmoid(gx[:, 0:H] + gh[:, 0:H])
        z = jax.nn.sigmoid(gx[:, H:2 * H] + gh[:, H:2 * H])
        n = jnp.tanh(gx[:, 2 * H:3 * H] + r * (gh[:, 2 * H:3 * H] + bhn))
        return (1.0 - z) * n + z * h

    h0 = jnp.zeros((NF, H), jnp.float32)
    h1 = jnp.zeros((NF, H), jnp.float32)

    # GRU sequence axis = signal batch B (the reference feeds (B, nframe, W)
    # to nn.GRU with batch_first=False); batch axis = NF.  B is tiny & static
    # -> fully unrolled; everything stays in vregs, no cross-time assembly.
    # TODO(synk): use lax.fori_loop(unroll=True) + VMEM scratch if B grows.
    for t in range(B):
        x_t = frames_ref[t]                                              # (NF, W)
        # windowed DWT decomposition
        decomp = jnp.dot(x_t, dec, preferred_element_type=jnp.float32)   # (NF, W)

        # merged decomp-side epilogue matmul [A | Cw], N = 2G = 256 lanes;
        # split at the vreg-aligned 128-lane boundary.
        ac = jnp.dot(decomp, pac, preferred_element_type=jnp.float32)    # (NF, 256)
        a_t = ac[:, :G]
        c_t = ac[:, G:] + pcb

        # layer 0 (fused r|z|n input projection, N = 192)
        gx0 = jnp.dot(decomp, w0ih, preferred_element_type=jnp.float32) + b0i
        h0 = gru_cell(gx0, h0, w0hh, bhn0)

        # layer 1
        gx1 = jnp.dot(h0, w1ih, preferred_element_type=jnp.float32) + b1i
        h1 = gru_cell(gx1, h1, w1hh, bhn1)

        # FC + sigmoid + masking + reconstruction folded into one packed
        # epilogue: out = A + sigmoid(Bv) * C = [recon | mask | masked | decomp].
        # Lane groups 0/3 have C == 0, so their sigmoid values are don't-care
        # (robust even if the sigmoid were approximated).
        bv = jnp.dot(h1, pbw, preferred_element_type=jnp.float32) + pbb
        out_ref[t] = a_t + jax.nn.sigmoid(bv) * c_t     # full-width (NF, 128) store


# ------------------------------- JAX glue -----------------------------------
def framing_padding(signal, W, hsize):
    B, C, S = signal.shape
    sstart = hsize - W
    nframe = math.ceil((S - sstart) / hsize)
    zpleft = -sstart
    zpright = (nframe - 1) * hsize + W - zpleft - S
    sigpad = jnp.pad(signal, ((0, 0), (0, 0), (max(zpleft, 0), max(zpright, 0))))
    return sigpad, nframe, zpleft


def framing(sigpad, nframe, W, hsize):
    # NOTE: the Hamming window is folded into the DWT decomposition matrix,
    # so raw (unwindowed) frames are produced here.
    sig2d = sigpad[:, 0, :]                                     # (B, L)
    idx = jnp.arange(nframe)[:, None] * hsize + jnp.arange(W)[None, :]
    return sig2d[:, idx]                                        # (B, nframe, W)


def unframing(x_enh, nframe, zpleft, hsize):
    B = x_enh.shape[0]
    first = x_enh[:, :, :hsize]                                 # (B, nframe, hsize)
    second = x_enh[:, :, hsize:2 * hsize]                       # (B, nframe, hsize)
    prev = jnp.concatenate(
        [jnp.zeros((B, 1, hsize), dtype=x_enh.dtype), second[:, :-1, :]], axis=1)
    chunks = first + prev                                       # overlap-add
    sout = chunks.reshape(B, 1, nframe * hsize)
    return sout[:, :, zpleft:]


# ------------------------------ parameters ----------------------------------
def init_params(key):
    assert NUM_GRU_LEVELS == 2, "fused kernel is written for exactly 2 GRU layers"
    H, Wl = HIDDEN_SIZE, WINDOW_LENGTH
    params = {}
    bound = 1.0 / math.sqrt(H)

    gru_layers = []
    for layer in range(NUM_GRU_LEVELS):
        in_size = Wl if layer == 0 else H
        key, k1, k2, k3, k4 = jax.random.split(key, 5)
        wih = jax.random.uniform(k1, (3 * H, in_size), jnp.float32, -bound, bound)
        whh = jax.random.uniform(k2, (3 * H, H), jnp.float32, -bound, bound)
        bih = jax.random.uniform(k3, (3 * H,), jnp.float32, -bound, bound)
        bhh = jax.random.uniform(k4, (3 * H,), jnp.float32, -bound, bound)
        # Fused, pre-transposed gate weights (columns ordered r|z|n):
        #   x @ wih.T -> (.., 3H);  h @ whh.T -> (.., 3H)
        # r/z input+hidden biases fold; the n gate keeps a separate hidden
        # bias (it sits inside r*(W_hn h + b_hn)).
        bi = jnp.concatenate([bih[0:H] + bhh[0:H],
                              bih[H:2 * H] + bhh[H:2 * H],
                              bih[2 * H:3 * H]])[None, :]            # (1, 3H)
        bhn = bhh[2 * H:3 * H][None, :]                              # (1, H)
        gru_layers.append(dict(wih=wih.T, whh=whh.T, bi=bi, bhn=bhn))
    params["gru"] = gru_layers

    key, k1, k2 = jax.random.split(key, 3)
    wfc = jax.random.uniform(k1, (Wl, H), jnp.float32, -bound, bound)
    bfc = jax.random.uniform(k2, (Wl,), jnp.float32, -bound, bound)
    wfc_t = wfc.T                                               # (H, W)

    Tm = build_dwt_matrix(Wl, WAVELET_SIZE, NUM_WAVELET_LAYERS)
    wind = np.hamming(Wl).astype(np.float32)
    # Hamming window folded into the decomposition matrix:
    #   decomp = (frames * wind) @ T.T  ==  frames @ (diag(wind) @ T.T)
    params["dwt_dec_w"] = jnp.asarray(wind[:, None] * Tm.T)     # (W, W)
    dwt_rec = jnp.asarray(Tm)                                   # recon = coeffs @ T

    # Lane-dense packed-output matrices: output lanes = [recon|mask|masked|decomp],
    # 4*W = 128 lanes.  packed = A + sigmoid(Bv) * C, exactly:
    #   A  = decomp @ [rec | 0 | 0 | I]
    #   Bv = h_gru  @ [0 | Wfc | Wfc | 0] + [-1e4 | bfc | bfc | -1e4]
    #   C  = decomp @ [0 | 0 | I | 0]   + [0 | 1 | 0 | 0]
    # A and C's weight are merged into a single (W, 256) matrix -> one N=256
    # epilogue matmul (full MXU output width on v6e/v7x).
    eye = jnp.eye(Wl, dtype=jnp.float32)
    zWW = jnp.zeros((Wl, Wl), jnp.float32)
    zHW = jnp.zeros((H, Wl), jnp.float32)
    NEG = jnp.float32(-1e4)
    pack_a = jnp.concatenate([dwt_rec, zWW, zWW, eye], axis=1)          # (W, 4W)
    pack_cw = jnp.concatenate([zWW, zWW, eye, zWW], axis=1)             # (W, 4W)
    params["pack_ac"] = jnp.concatenate([pack_a, pack_cw], axis=1)      # (W, 8W=256)
    params["pack_b_w"] = jnp.concatenate([zHW, wfc_t, wfc_t, zHW], axis=1)  # (H, 4W)
    params["pack_b_b"] = jnp.concatenate(
        [jnp.full((Wl,), NEG), bfc, bfc, jnp.full((Wl,), NEG)])[None, :]    # (1, 4W)
    params["pack_c_b"] = jnp.concatenate(
        [jnp.zeros((Wl,)), jnp.ones((Wl,)), jnp.zeros((Wl,)), jnp.zeros((Wl,))]
    ).astype(jnp.float32)[None, :]                                          # (1, 4W)
    return params


# ------------------------------- forward ------------------------------------
def wavelet_mask_forward(x, params):
    B = x.shape[0]
    W, hsize, H = WINDOW_LENGTH, HSIZE, HIDDEN_SIZE

    # framing (JAX glue; no window multiply — folded into the DWT matrix)
    sigpad, nframe, zpleft = framing_padding(x, W, hsize)
    frames = framing(sigpad, nframe, W, hsize)                  # (B, nframe, W)

    # Tile the (independent) frame axis.  Target >= 2 grid steps so both v7x
    # TensorCores get work for mid-size signals; cap the tile for very long
    # signals.  Per-step VMEM is only a few MiB even at the cap.
    nf_tile = min(_round_up(-(-nframe // 2), 8), NF_BLOCK_MAX)
    nf_pad = _round_up(nframe, nf_tile)
    frames_pad = jnp.pad(frames, ((0, 0), (0, nf_pad - nframe), (0, 0)))

    gru0, gru1 = params["gru"]
    packed = pl.pallas_call(
        _fused_kernel,
        out_shape=jax.ShapeDtypeStruct((B, nf_pad, 4 * W), jnp.float32),
        grid=(nf_pad // nf_tile,),
        in_specs=[
            pl.BlockSpec((B, nf_tile, W), lambda i: (0, i, 0)),   # frames
            pl.BlockSpec((W, W), lambda i: (0, 0)),               # windowed DWT decomp matrix
            pl.BlockSpec((W, 3 * H), lambda i: (0, 0)),           # gru0 W_ih (r|z|n fused)
            pl.BlockSpec((H, 3 * H), lambda i: (0, 0)),           # gru0 W_hh (r|z|n fused)
            pl.BlockSpec((1, 3 * H), lambda i: (0, 0)),           # gru0 folded input biases
            pl.BlockSpec((1, H), lambda i: (0, 0)),               # gru0 n-gate hidden bias
            pl.BlockSpec((H, 3 * H), lambda i: (0, 0)),           # gru1 W_ih
            pl.BlockSpec((H, 3 * H), lambda i: (0, 0)),           # gru1 W_hh
            pl.BlockSpec((1, 3 * H), lambda i: (0, 0)),           # gru1 folded input biases
            pl.BlockSpec((1, H), lambda i: (0, 0)),               # gru1 n-gate hidden bias
            pl.BlockSpec((W, 8 * W), lambda i: (0, 0)),           # merged pack [A | Cw]
            pl.BlockSpec((H, 4 * W), lambda i: (0, 0)),           # pack B weight
            pl.BlockSpec((1, 4 * W), lambda i: (0, 0)),           # pack B bias
            pl.BlockSpec((1, 4 * W), lambda i: (0, 0)),           # pack C bias
        ],
        out_specs=pl.BlockSpec((B, nf_tile, 4 * W), lambda i: (0, i, 0)),
        compiler_params=pltpu.CompilerParams(
            dimension_semantics=("parallel",)),
    )(frames_pad, params["dwt_dec_w"],
      gru0["wih"], gru0["whh"], gru0["bi"], gru0["bhn"],
      gru1["wih"], gru1["whh"], gru1["bi"], gru1["bhn"],
      params["pack_ac"], params["pack_b_w"], params["pack_b_b"],
      params["pack_c_b"])

    # unpack the lane-dense result and drop padded frames
    recon = packed[:, :nframe, 0 * W:1 * W]
    mask = packed[:, :nframe, 1 * W:2 * W]
    masked_decomposition = packed[:, :nframe, 2 * W:3 * W]
    # packed[:, :, 3W:4W] (raw decomp) is filler that keeps stores 128-lane
    # dense; it is never read downstream.

    # reconstruct the UNMASKED decomposition (exactly as the reference does)
    sout = unframing(recon, nframe, zpleft, hsize)              # (B, 1, L)
    return sout, mask, masked_decomposition


# --------------------------------- main --------------------------------------
if __name__ == "__main__":
    key = jax.random.PRNGKey(0)
    pkey, xkey = jax.random.split(key)
    params = init_params(pkey)
    x = jax.random.normal(xkey, (BATCH, 1, SIGNAL_LEN), dtype=jnp.float32)

    fwd = jax.jit(wavelet_mask_forward)
    sout, mask, masked = fwd(x, params)
    jax.block_until_ready((sout, mask, masked))
    print("KERNEL_OK")
</pallas_src>

<mosaic_0001>
module attributes {stable_mosaic.version = 11 : i64} {
  func.func @_fused_kernel(%arg0: i32, %arg1: memref<2x8x32xf32, #tpu.memory_space<vmem>>, %arg2: memref<32x32xf32, #tpu.memory_space<vmem>>, %arg3: memref<32x192xf32, #tpu.memory_space<vmem>>, %arg4: memref<64x192xf32, #tpu.memory_space<vmem>>, %arg5: memref<1x192xf32, #tpu.memory_space<vmem>>, %arg6: memref<1x64xf32, #tpu.memory_space<vmem>>, %arg7: memref<64x192xf32, #tpu.memory_space<vmem>>, %arg8: memref<64x192xf32, #tpu.memory_space<vmem>>, %arg9: memref<1x192xf32, #tpu.memory_space<vmem>>, %arg10: memref<1x64xf32, #tpu.memory_space<vmem>>, %arg11: memref<32x256xf32, #tpu.memory_space<vmem>>, %arg12: memref<64x128xf32, #tpu.memory_space<vmem>>, %arg13: memref<1x128xf32, #tpu.memory_space<vmem>>, %arg14: memref<1x128xf32, #tpu.memory_space<vmem>>, %arg15: memref<2x8x128xf32, #tpu.memory_space<vmem>>) attributes {dimension_semantics = [#tpu.dimension_semantics<parallel>], iteration_bounds = array<i64: 1>, scalar_prefetch = 0 : i64, scratch_operands = 0 : i64, tpu.core_type = #tpu.core_type<tc>, window_params = [{transform_indices = @transform_0, window_bounds = array<i64: 2, 8, 32>}, {pipeline_mode = #tpu.pipeline_mode<synchronous>, transform_indices = @transform_1, window_bounds = array<i64: 32, 32>}, {pipeline_mode = #tpu.pipeline_mode<synchronous>, transform_indices = @transform_2, window_bounds = array<i64: 32, 192>}, {pipeline_mode = #tpu.pipeline_mode<synchronous>, transform_indices = @transform_3, window_bounds = array<i64: 64, 192>}, {pipeline_mode = #tpu.pipeline_mode<synchronous>, transform_indices = @transform_4, window_bounds = array<i64: 1, 192>}, {pipeline_mode = #tpu.pipeline_mode<synchronous>, transform_indices = @transform_5, window_bounds = array<i64: 1, 64>}, {pipeline_mode = #tpu.pipeline_mode<synchronous>, transform_indices = @transform_6, window_bounds = array<i64: 64, 192>}, {pipeline_mode = #tpu.pipeline_mode<synchronous>, transform_indices = @transform_7, window_bounds = array<i64: 64, 192>}, {pipeline_mode = #tpu.pipeline_mode<synchronous>, transform_indices = @transform_8, window_bounds = array<i64: 1, 192>}, {pipeline_mode = #tpu.pipeline_mode<synchronous>, transform_indices = @transform_9, window_bounds = array<i64: 1, 64>}, {pipeline_mode = #tpu.pipeline_mode<synchronous>, transform_indices = @transform_10, window_bounds = array<i64: 32, 256>}, {pipeline_mode = #tpu.pipeline_mode<synchronous>, transform_indices = @transform_11, window_bounds = array<i64: 64, 128>}, {pipeline_mode = #tpu.pipeline_mode<synchronous>, transform_indices = @transform_12, window_bounds = array<i64: 1, 128>}, {pipeline_mode = #tpu.pipeline_mode<synchronous>, transform_indices = @transform_13, window_bounds = array<i64: 1, 128>}, {transform_indices = @transform_14, window_bounds = array<i64: 2, 8, 128>}]} {
    %c0 = arith.constant 0 : index
    %c0_0 = arith.constant 0 : index
    %0 = vector.load %arg2[%c0, %c0_0] : memref<32x32xf32, #tpu.memory_space<vmem>>, vector<32x32xf32>
    %c0_1 = arith.constant 0 : index
    %c0_2 = arith.constant 0 : index
    %1 = vector.load %arg3[%c0_1, %c0_2] : memref<32x192xf32, #tpu.memory_space<vmem>>, vector<32x192xf32>
    %c0_3 = arith.constant 0 : index
    %c0_4 = arith.constant 0 : index
    %2 = vector.load %arg4[%c0_3, %c0_4] : memref<64x192xf32, #tpu.memory_space<vmem>>, vector<64x192xf32>
    %c0_5 = arith.constant 0 : index
    %c0_6 = arith.constant 0 : index
    %3 = vector.load %arg7[%c0_5, %c0_6] : memref<64x192xf32, #tpu.memory_space<vmem>>, vector<64x192xf32>
    %c0_7 = arith.constant 0 : index
    %c0_8 = arith.constant 0 : index
    %4 = vector.load %arg8[%c0_7, %c0_8] : memref<64x192xf32, #tpu.memory_space<vmem>>, vector<64x192xf32>
    %c0_9 = arith.constant 0 : index
    %c0_10 = arith.constant 0 : index
    %5 = vector.load %arg11[%c0_9, %c0_10] : memref<32x256xf32, #tpu.memory_space<vmem>>, vector<32x256xf32>
    %c0_11 = arith.constant 0 : index
    %c0_12 = arith.constant 0 : index
    %6 = vector.load %arg12[%c0_11, %c0_12] : memref<64x128xf32, #tpu.memory_space<vmem>>, vector<64x128xf32>
    %c0_13 = arith.constant 0 : index
    %c0_14 = arith.constant 0 : index
    %7 = vector.load %arg5[%c0_13, %c0_14] : memref<1x192xf32, #tpu.memory_space<vmem>>, vector<1x192xf32>
    %8 = vector.shape_cast %7 : vector<1x192xf32> to vector<1x192xf32>
    %9 = vector.broadcast %8 : vector<1x192xf32> to vector<8x192xf32>
    %c0_15 = arith.constant 0 : index
    %c0_16 = arith.constant 0 : index
    %10 = vector.load %arg9[%c0_15, %c0_16] : memref<1x192xf32, #tpu.memory_space<vmem>>, vector<1x192xf32>
    %11 = vector.shape_cast %10 : vector<1x192xf32> to vector<1x192xf32>
    %12 = vector.broadcast %11 : vector<1x192xf32> to vector<8x192xf32>
    %c0_17 = arith.constant 0 : index
    %c0_18 = arith.constant 0 : index
    %13 = vector.load %arg6[%c0_17, %c0_18] : memref<1x64xf32, #tpu.memory_space<vmem>>, vector<1x64xf32>
    %14 = vector.shape_cast %13 : vector<1x64xf32> to vector<1x64xf32>
    %15 = vector.broadcast %14 : vector<1x64xf32> to vector<8x64xf32>
    %c0_19 = arith.constant 0 : index
    %c0_20 = arith.constant 0 : index
    %16 = vector.load %arg10[%c0_19, %c0_20] : memref<1x64xf32, #tpu.memory_space<vmem>>, vector<1x64xf32>
    %17 = vector.shape_cast %16 : vector<1x64xf32> to vector<1x64xf32>
    %18 = vector.broadcast %17 : vector<1x64xf32> to vector<8x64xf32>
    %c0_21 = arith.constant 0 : index
    %c0_22 = arith.constant 0 : index
    %19 = vector.load %arg13[%c0_21, %c0_22] : memref<1x128xf32, #tpu.memory_space<vmem>>, vector<1x128xf32>
    %20 = vector.shape_cast %19 : vector<1x128xf32> to vector<1x128xf32>
    %21 = vector.broadcast %20 : vector<1x128xf32> to vector<8x128xf32>
    %c0_23 = arith.constant 0 : index
    %c0_24 = arith.constant 0 : index
    %22 = vector.load %arg14[%c0_23, %c0_24] : memref<1x128xf32, #tpu.memory_space<vmem>>, vector<1x128xf32>
    %23 = vector.shape_cast %22 : vector<1x128xf32> to vector<1x128xf32>
    %24 = vector.broadcast %23 : vector<1x128xf32> to vector<8x128xf32>
    %cst = arith.constant 0.000000e+00 : f32
    %25 = vector.broadcast %cst : f32 to vector<8x64xf32>
    %cst_25 = arith.constant 0.000000e+00 : f32
    %26 = vector.broadcast %cst_25 : f32 to vector<8x64xf32>
    %c0_26 = arith.constant 0 : index
    %c0_27 = arith.constant 0 : index
    %c0_28 = arith.constant 0 : index
    %27 = vector.load %arg1[%c0_26, %c0_27, %c0_28] : memref<2x8x32xf32, #tpu.memory_space<vmem>>, vector<1x8x32xf32>
    %28 = vector.shape_cast %27 : vector<1x8x32xf32> to vector<8x32xf32>
    %cst_29 = arith.constant dense<0.000000e+00> : vector<8x32xf32>
    %29 = tpu.matmul %28, %0, %cst_29 {dimension_numbers = #tpu.dot_dimension_numbers<[1], [0], [0], [1], [0, 0, 1, 1], [], []>} : vector<8x32xf32>, vector<32x32xf32>, vector<8x32xf32> -> vector<8x32xf32>
    %cst_30 = arith.constant dense<0.000000e+00> : vector<8x256xf32>
    %30 = tpu.matmul %29, %5, %cst_30 {dimension_numbers = #tpu.dot_dimension_numbers<[1], [0], [0], [1], [0, 0, 1, 1], [], []>} : vector<8x32xf32>, vector<32x256xf32>, vector<8x256xf32> -> vector<8x256xf32>
    %31 = vector.extract_strided_slice %30 {offsets = [0, 0], sizes = [8, 128], strides = [1, 1]} : vector<8x256xf32> to vector<8x128xf32>
    %32 = vector.extract_strided_slice %30 {offsets = [0, 128], sizes = [8, 128], strides = [1, 1]} : vector<8x256xf32> to vector<8x128xf32>
    %33 = arith.addf %32, %24 : vector<8x128xf32>
    %cst_31 = arith.constant dense<0.000000e+00> : vector<8x192xf32>
    %34 = tpu.matmul %29, %1, %cst_31 {dimension_numbers = #tpu.dot_dimension_numbers<[1], [0], [0], [1], [0, 0, 1, 1], [], []>} : vector<8x32xf32>, vector<32x192xf32>, vector<8x192xf32> -> vector<8x192xf32>
    %35 = arith.addf %34, %9 : vector<8x192xf32>
    %cst_32 = arith.constant dense<0.000000e+00> : vector<8x192xf32>
    %36 = tpu.matmul %25, %2, %cst_32 {dimension_numbers = #tpu.dot_dimension_numbers<[1], [0], [0], [1], [0, 0, 1, 1], [], []>} : vector<8x64xf32>, vector<64x192xf32>, vector<8x192xf32> -> vector<8x192xf32>
    %37 = vector.extract_strided_slice %35 {offsets = [0, 0], sizes = [8, 64], strides = [1, 1]} : vector<8x192xf32> to vector<8x64xf32>
    %38 = vector.extract_strided_slice %36 {offsets = [0, 0], sizes = [8, 64], strides = [1, 1]} : vector<8x192xf32> to vector<8x64xf32>
    %39 = arith.addf %37, %38 : vector<8x64xf32>
    %40 = arith.negf %39 : vector<8x64xf32>
    %41 = math.exp %40 : vector<8x64xf32>
    %cst_33 = arith.constant 1.000000e+00 : f32
    %42 = vector.broadcast %cst_33 : f32 to vector<8x64xf32>
    %43 = arith.addf %42, %41 : vector<8x64xf32>
    %44 = arith.divf %42, %43 : vector<8x64xf32>
    %45 = vector.extract_strided_slice %35 {offsets = [0, 64], sizes = [8, 64], strides = [1, 1]} : vector<8x192xf32> to vector<8x64xf32>
    %46 = vector.extract_strided_slice %36 {offsets = [0, 64], sizes = [8, 64], strides = [1, 1]} : vector<8x192xf32> to vector<8x64xf32>
    %47 = arith.addf %45, %46 : vector<8x64xf32>
    %48 = arith.negf %47 : vector<8x64xf32>
    %49 = math.exp %48 : vector<8x64xf32>
    %cst_34 = arith.constant 1.000000e+00 : f32
    %50 = vector.broadcast %cst_34 : f32 to vector<8x64xf32>
    %51 = arith.addf %50, %49 : vector<8x64xf32>
    %52 = arith.divf %50, %51 : vector<8x64xf32>
    %53 = vector.extract_strided_slice %35 {offsets = [0, 128], sizes = [8, 64], strides = [1, 1]} : vector<8x192xf32> to vector<8x64xf32>
    %54 = vector.extract_strided_slice %36 {offsets = [0, 128], sizes = [8, 64], strides = [1, 1]} : vector<8x192xf32> to vector<8x64xf32>
    %55 = arith.addf %54, %15 : vector<8x64xf32>
    %56 = arith.mulf %44, %55 : vector<8x64xf32>
    %57 = arith.addf %53, %56 : vector<8x64xf32>
    %58 = math.tanh %57 : vector<8x64xf32>
    %cst_35 = arith.constant 1.000000e+00 : f32
    %59 = vector.broadcast %cst_35 : f32 to vector<8x64xf32>
    %60 = arith.subf %59, %52 : vector<8x64xf32>
    %61 = arith.mulf %60, %58 : vector<8x64xf32>
    %62 = arith.mulf %52, %25 : vector<8x64xf32>
    %63 = arith.addf %61, %62 : vector<8x64xf32>
    %cst_36 = arith.constant dense<0.000000e+00> : vector<8x192xf32>
    %64 = tpu.matmul %63, %3, %cst_36 {dimension_numbers = #tpu.dot_dimension_numbers<[1], [0], [0], [1], [0, 0, 1, 1], [], []>} : vector<8x64xf32>, vector<64x192xf32>, vector<8x192xf32> -> vector<8x192xf32>
    %65 = arith.addf %64, %12 : vector<8x192xf32>
    %cst_37 = arith.constant dense<0.000000e+00> : vector<8x192xf32>
    %66 = tpu.matmul %26, %4, %cst_37 {dimension_numbers = #tpu.dot_dimension_numbers<[1], [0], [0], [1], [0, 0, 1, 1], [], []>} : vector<8x64xf32>, vector<64x192xf32>, vector<8x192xf32> -> vector<8x192xf32>
    %67 = vector.extract_strided_slice %65 {offsets = [0, 0], sizes = [8, 64], strides = [1, 1]} : vector<8x192xf32> to vector<8x64xf32>
    %68 = vector.extract_strided_slice %66 {offsets = [0, 0], sizes = [8, 64], strides = [1, 1]} : vector<8x192xf32> to vector<8x64xf32>
    %69 = arith.addf %67, %68 : vector<8x64xf32>
    %70 = arith.negf %69 : vector<8x64xf32>
    %71 = math.exp %70 : vector<8x64xf32>
    %cst_38 = arith.constant 1.000000e+00 : f32
    %72 = vector.broadcast %cst_38 : f32 to vector<8x64xf32>
    %73 = arith.addf %72, %71 : vector<8x64xf32>
    %74 = arith.divf %72, %73 : vector<8x64xf32>
    %75 = vector.extract_strided_slice %65 {offsets = [0, 64], sizes = [8, 64], strides = [1, 1]} : vector<8x192xf32> to vector<8x64xf32>
    %76 = vector.extract_strided_slice %66 {offsets = [0, 64], sizes = [8, 64], strides = [1, 1]} : vector<8x192xf32> to vector<8x64xf32>
    %77 = arith.addf %75, %76 : vector<8x64xf32>
    %78 = arith.negf %77 : vector<8x64xf32>
    %79 = math.exp %78 : vector<8x64xf32>
    %cst_39 = arith.constant 1.000000e+00 : f32
    %80 = vector.broadcast %cst_39 : f32 to vector<8x64xf32>
    %81 = arith.addf %80, %79 : vector<8x64xf32>
    %82 = arith.divf %80, %81 : vector<8x64xf32>
    %83 = vector.extract_strided_slice %65 {offsets = [0, 128], sizes = [8, 64], strides = [1, 1]} : vector<8x192xf32> to vector<8x64xf32>
    %84 = vector.extract_strided_slice %66 {offsets = [0, 128], sizes = [8, 64], strides = [1, 1]} : vector<8x192xf32> to vector<8x64xf32>
    %85 = arith.addf %84, %18 : vector<8x64xf32>
    %86 = arith.mulf %74, %85 : vector<8x64xf32>
    %87 = arith.addf %83, %86 : vector<8x64xf32>
    %88 = math.tanh %87 : vector<8x64xf32>
    %cst_40 = arith.constant 1.000000e+00 : f32
    %89 = vector.broadcast %cst_40 : f32 to vector<8x64xf32>
    %90 = arith.subf %89, %82 : vector<8x64xf32>
    %91 = arith.mulf %90, %88 : vector<8x64xf32>
    %92 = arith.mulf %82, %26 : vector<8x64xf32>
    %93 = arith.addf %91, %92 : vector<8x64xf32>
    %cst_41 = arith.constant dense<0.000000e+00> : vector<8x128xf32>
    %94 = tpu.matmul %93, %6, %cst_41 {dimension_numbers = #tpu.dot_dimension_numbers<[1], [0], [0], [1], [0, 0, 1, 1], [], []>} : vector<8x64xf32>, vector<64x128xf32>, vector<8x128xf32> -> vector<8x128xf32>
    %95 = arith.addf %94, %21 : vector<8x128xf32>
    %96 = arith.negf %95 : vector<8x128xf32>
    %97 = math.exp %96 : vector<8x128xf32>
    %cst_42 = arith.constant 1.000000e+00 : f32
    %98 = vector.broadcast %cst_42 : f32 to vector<8x128xf32>
    %99 = arith.addf %98, %97 : vector<8x128xf32>
    %100 = arith.divf %98, %99 : vector<8x128xf32>
    %101 = arith.mulf %100, %33 : vector<8x128xf32>
    %102 = arith.addf %31, %101 : vector<8x128xf32>
    %c0_43 = arith.constant 0 : index
    %c0_44 = arith.constant 0 : index
    %c0_45 = arith.constant 0 : index
    %103 = vector.load %arg15[%c0_43, %c0_44, %c0_45] : memref<2x8x128xf32, #tpu.memory_space<vmem>>, vector<1x8x128xf32>
    %104 = vector.shape_cast %103 : vector<1x8x128xf32> to vector<8x128xf32>
    %105 = vector.shape_cast %102 : vector<8x128xf32> to vector<1x8x128xf32>
    tpu.vector_store %arg15[%c0_43, %c0_44, %c0_45], %105 {strides = array<i32>} : memref<2x8x128xf32, #tpu.memory_space<vmem>>, vector<1x8x128xf32>,
    %c1 = arith.constant 1 : index
    %c0_46 = arith.constant 0 : index
    %c0_47 = arith.constant 0 : index
    %106 = vector.load %arg1[%c1, %c0_46, %c0_47] : memref<2x8x32xf32, #tpu.memory_space<vmem>>, vector<1x8x32xf32>
    %107 = vector.shape_cast %106 : vector<1x8x32xf32> to vector<8x32xf32>
    %cst_48 = arith.constant dense<0.000000e+00> : vector<8x32xf32>
    %108 = tpu.matmul %107, %0, %cst_48 {dimension_numbers = #tpu.dot_dimension_numbers<[1], [0], [0], [1], [0, 0, 1, 1], [], []>} : vector<8x32xf32>, vector<32x32xf32>, vector<8x32xf32> -> vector<8x32xf32>
    %cst_49 = arith.constant dense<0.000000e+00> : vector<8x256xf32>
    %109 = tpu.matmul %108, %5, %cst_49 {dimension_numbers = #tpu.dot_dimension_numbers<[1], [0], [0], [1], [0, 0, 1, 1], [], []>} : vector<8x32xf32>, vector<32x256xf32>, vector<8x256xf32> -> vector<8x256xf32>
    %110 = vector.extract_strided_slice %109 {offsets = [0, 0], sizes = [8, 128], strides = [1, 1]} : vector<8x256xf32> to vector<8x128xf32>
    %111 = vector.extract_strided_slice %109 {offsets = [0, 128], sizes = [8, 128], strides = [1, 1]} : vector<8x256xf32> to vector<8x128xf32>
    %112 = arith.addf %111, %24 : vector<8x128xf32>
    %cst_50 = arith.constant dense<0.000000e+00> : vector<8x192xf32>
    %113 = tpu.matmul %108, %1, %cst_50 {dimension_numbers = #tpu.dot_dimension_numbers<[1], [0], [0], [1], [0, 0, 1, 1], [], []>} : vector<8x32xf32>, vector<32x192xf32>, vector<8x192xf32> -> vector<8x192xf32>
    %114 = arith.addf %113, %9 : vector<8x192xf32>
    %cst_51 = arith.constant dense<0.000000e+00> : vector<8x192xf32>
    %115 = tpu.matmul %63, %2, %cst_51 {dimension_numbers = #tpu.dot_dimension_numbers<[1], [0], [0], [1], [0, 0, 1, 1], [], []>} : vector<8x64xf32>, vector<64x192xf32>, vector<8x192xf32> -> vector<8x192xf32>
    %116 = vector.extract_strided_slice %114 {offsets = [0, 0], sizes = [8, 64], strides = [1, 1]} : vector<8x192xf32> to vector<8x64xf32>
    %117 = vector.extract_strided_slice %115 {offsets = [0, 0], sizes = [8, 64], strides = [1, 1]} : vector<8x192xf32> to vector<8x64xf32>
    %118 = arith.addf %116, %117 : vector<8x64xf32>
    %119 = arith.negf %118 : vector<8x64xf32>
    %120 = math.exp %119 : vector<8x64xf32>
    %cst_52 = arith.constant 1.000000e+00 : f32
    %121 = vector.broadcast %cst_52 : f32 to vector<8x64xf32>
    %122 = arith.addf %121, %120 : vector<8x64xf32>
    %123 = arith.divf %121, %122 : vector<8x64xf32>
    %124 = vector.extract_strided_slice %114 {offsets = [0, 64], sizes = [8, 64], strides = [1, 1]} : vector<8x192xf32> to vector<8x64xf32>
    %125 = vector.extract_strided_slice %115 {offsets = [0, 64], sizes = [8, 64], strides = [1, 1]} : vector<8x192xf32> to vector<8x64xf32>
    %126 = arith.addf %124, %125 : vector<8x64xf32>
    %127 = arith.negf %126 : vector<8x64xf32>
    %128 = math.exp %127 : vector<8x64xf32>
    %cst_53 = arith.constant 1.000000e+00 : f32
    %129 = vector.broadcast %cst_53 : f32 to vector<8x64xf32>
    %130 = arith.addf %129, %128 : vector<8x64xf32>
    %131 = arith.divf %129, %130 : vector<8x64xf32>
    %132 = vector.extract_strided_slice %114 {offsets = [0, 128], sizes = [8, 64], strides = [1, 1]} : vector<8x192xf32> to vector<8x64xf32>
    %133 = vector.extract_strided_slice %115 {offsets = [0, 128], sizes = [8, 64], strides = [1, 1]} : vector<8x192xf32> to vector<8x64xf32>
    %134 = arith.addf %133, %15 : vector<8x64xf32>
    %135 = arith.mulf %123, %134 : vector<8x64xf32>
    %136 = arith.addf %132, %135 : vector<8x64xf32>
    %137 = math.tanh %136 : vector<8x64xf32>
    %cst_54 = arith.constant 1.000000e+00 : f32
    %138 = vector.broadcast %cst_54 : f32 to vector<8x64xf32>
    %139 = arith.subf %138, %131 : vector<8x64xf32>
    %140 = arith.mulf %139, %137 : vector<8x64xf32>
    %141 = arith.mulf %131, %63 : vector<8x64xf32>
    %142 = arith.addf %140, %141 : vector<8x64xf32>
    %cst_55 = arith.constant dense<0.000000e+00> : vector<8x192xf32>
    %143 = tpu.matmul %142, %3, %cst_55 {dimension_numbers = #tpu.dot_dimension_numbers<[1], [0], [0], [1], [0, 0, 1, 1], [], []>} : vector<8x64xf32>, vector<64x192xf32>, vector<8x192xf32> -> vector<8x192xf32>
    %144 = arith.addf %143, %12 : vector<8x192xf32>
    %cst_56 = arith.constant dense<0.000000e+00> : vector<8x192xf32>
    %145 = tpu.matmul %93, %4, %cst_56 {dimension_numbers = #tpu.dot_dimension_numbers<[1], [0], [0], [1], [0, 0, 1, 1], [], []>} : vector<8x64xf32>, vector<64x192xf32>, vector<8x192xf32> -> vector<8x192xf32>
    %146 = vector.extract_strided_slice %144 {offsets = [0, 0], sizes = [8, 64], strides = [1, 1]} : vector<8x192xf32> to vector<8x64xf32>
    %147 = vector.extract_strided_slice %145 {offsets = [0, 0], sizes = [8, 64], strides = [1, 1]} : vector<8x192xf32> to vector<8x64xf32>
    %148 = arith.addf %146, %147 : vector<8x64xf32>
    %149 = arith.negf %148 : vector<8x64xf32>
    %150 = math.exp %149 : vector<8x64xf32>
    %cst_57 = arith.constant 1.000000e+00 : f32
    %151 = vector.broadcast %cst_57 : f32 to vector<8x64xf32>
    %152 = arith.addf %151, %150 : vector<8x64xf32>
    %153 = arith.divf %151, %152 : vector<8x64xf32>
    %154 = vector.extract_strided_slice %144 {offsets = [0, 64], sizes = [8, 64], strides = [1, 1]} : vector<8x192xf32> to vector<8x64xf32>
    %155 = vector.extract_strided_slice %145 {offsets = [0, 64], sizes = [8, 64], strides = [1, 1]} : vector<8x192xf32> to vector<8x64xf32>
    %156 = arith.addf %154, %155 : vector<8x64xf32>
    %157 = arith.negf %156 : vector<8x64xf32>
    %158 = math.exp %157 : vector<8x64xf32>
    %cst_58 = arith.constant 1.000000e+00 : f32
    %159 = vector.broadcast %cst_58 : f32 to vector<8x64xf32>
    %160 = arith.addf %159, %158 : vector<8x64xf32>
    %161 = arith.divf %159, %160 : vector<8x64xf32>
    %162 = vector.extract_strided_slice %144 {offsets = [0, 128], sizes = [8, 64], strides = [1, 1]} : vector<8x192xf32> to vector<8x64xf32>
    %163 = vector.extract_strided_slice %145 {offsets = [0, 128], sizes = [8, 64], strides = [1, 1]} : vector<8x192xf32> to vector<8x64xf32>
    %164 = arith.addf %163, %18 : vector<8x64xf32>
    %165 = arith.mulf %153, %164 : vector<8x64xf32>
    %166 = arith.addf %162, %165 : vector<8x64xf32>
    %167 = math.tanh %166 : vector<8x64xf32>
    %cst_59 = arith.constant 1.000000e+00 : f32
    %168 = vector.broadcast %cst_59 : f32 to vector<8x64xf32>
    %169 = arith.subf %168, %161 : vector<8x64xf32>
    %170 = arith.mulf %169, %167 : vector<8x64xf32>
    %171 = arith.mulf %161, %93 : vector<8x64xf32>
    %172 = arith.addf %170, %171 : vector<8x64xf32>
    %cst_60 = arith.constant dense<0.000000e+00> : vector<8x128xf32>
    %173 = tpu.matmul %172, %6, %cst_60 {dimension_numbers = #tpu.dot_dimension_numbers<[1], [0], [0], [1], [0, 0, 1, 1], [], []>} : vector<8x64xf32>, vector<64x128xf32>, vector<8x128xf32> -> vector<8x128xf32>
    %174 = arith.addf %173, %21 : vector<8x128xf32>
    %175 = arith.negf %174 : vector<8x128xf32>
    %176 = math.exp %175 : vector<8x128xf32>
    %cst_61 = arith.constant 1.000000e+00 : f32
    %177 = vector.broadcast %cst_61 : f32 to vector<8x128xf32>
    %178 = arith.addf %177, %176 : vector<8x128xf32>
    %179 = arith.divf %177, %178 : vector<8x128xf32>
    %180 = arith.mulf %179, %112 : vector<8x128xf32>
    %181 = arith.addf %110, %180 : vector<8x128xf32>
    %c1_62 = arith.constant 1 : index
    %c0_63 = arith.constant 0 : index
    %c0_64 = arith.constant 0 : index
    %182 = vector.load %arg15[%c1_62, %c0_63, %c0_64] : memref<2x8x128xf32, #tpu.memory_space<vmem>>, vector<1x8x128xf32>
    %183 = vector.shape_cast %182 : vector<1x8x128xf32> to vector<8x128xf32>
    %184 = vector.shape_cast %181 : vector<8x128xf32> to vector<1x8x128xf32>
    tpu.vector_store %arg15[%c1_62, %c0_63, %c0_64], %184 {strides = array<i32>} : memref<2x8x128xf32, #tpu.memory_space<vmem>>, vector<1x8x128xf32>,
    return
  }
  func.func @transform_0(%arg0: i32) -> (i32, i32, i32) {
    %c0_i32 = arith.constant 0 : i32
    %c0_i32_0 = arith.constant 0 : i32
    %c0_i32_1 = arith.constant 0 : i32
    return %c0_i32, %arg0, %c0_i32_0 : i32, i32, i32
  }
  func.func @transform_1(%arg0: i32) -> (i32, i32) {
    %c0_i32 = arith.constant 0 : i32
    %c0_i32_0 = arith.constant 0 : i32
    %c0_i32_1 = arith.constant 0 : i32
    return %c0_i32, %c0_i32_0 : i32, i32
  }
  func.func @transform_2(%arg0: i32) -> (i32, i32) {
    %c0_i32 = arith.constant 0 : i32
    %c0_i32_0 = arith.constant 0 : i32
    %c0_i32_1 = arith.constant 0 : i32
    return %c0_i32, %c0_i32_0 : i32, i32
  }
  func.func @transform_3(%arg0: i32) -> (i32, i32) {
    %c0_i32 = arith.constant 0 : i32
    %c0_i32_0 = arith.constant 0 : i32
    %c0_i32_1 = arith.constant 0 : i32
    return %c0_i32, %c0_i32_0 : i32, i32
  }
  func.func @transform_4(%arg0: i32) -> (i32, i32) {
    %c0_i32 = arith.constant 0 : i32
    %c0_i32_0 = arith.constant 0 : i32
    %c0_i32_1 = arith.constant 0 : i32
    return %c0_i32, %c0_i32_0 : i32, i32
  }
  func.func @transform_5(%arg0: i32) -> (i32, i32) {
    %c0_i32 = arith.constant 0 : i32
    %c0_i32_0 = arith.constant 0 : i32
    %c0_i32_1 = arith.constant 0 : i32
    return %c0_i32, %c0_i32_0 : i32, i32
  }
  func.func @transform_6(%arg0: i32) -> (i32, i32) {
    %c0_i32 = arith.constant 0 : i32
    %c0_i32_0 = arith.constant 0 : i32
    %c0_i32_1 = arith.constant 0 : i32
    return %c0_i32, %c0_i32_0 : i32, i32
  }
  func.func @transform_7(%arg0: i32) -> (i32, i32) {
    %c0_i32 = arith.constant 0 : i32
    %c0_i32_0 = arith.constant 0 : i32
    %c0_i32_1 = arith.constant 0 : i32
    return %c0_i32, %c0_i32_0 : i32, i32
  }
  func.func @transform_8(%arg0: i32) -> (i32, i32) {
    %c0_i32 = arith.constant 0 : i32
    %c0_i32_0 = arith.constant 0 : i32
    %c0_i32_1 = arith.constant 0 : i32
    return %c0_i32, %c0_i32_0 : i32, i32
  }
  func.func @transform_9(%arg0: i32) -> (i32, i32) {
    %c0_i32 = arith.constant 0 : i32
    %c0_i32_0 = arith.constant 0 : i32
    %c0_i32_1 = arith.constant 0 : i32
    return %c0_i32, %c0_i32_0 : i32, i32
  }
  func.func @transform_10(%arg0: i32) -> (i32, i32) {
    %c0_i32 = arith.constant 0 : i32
    %c0_i32_0 = arith.constant 0 : i32
    %c0_i32_1 = arith.constant 0 : i32
    return %c0_i32, %c0_i32_0 : i32, i32
  }
  func.func @transform_11(%arg0: i32) -> (i32, i32) {
    %c0_i32 = arith.constant 0 : i32
    %c0_i32_0 = arith.constant 0 : i32
    %c0_i32_1 = arith.constant 0 : i32
    return %c0_i32, %c0_i32_0 : i32, i32
  }
  func.func @transform_12(%arg0: i32) -> (i32, i32) {
    %c0_i32 = arith.constant 0 : i32
    %c0_i32_0 = arith.constant 0 : i32
    %c0_i32_1 = arith.constant 0 : i32
    return %c0_i32, %c0_i32_0 : i32, i32
  }
  func.func @transform_13(%arg0: i32) -> (i32, i32) {
    %c0_i32 = arith.constant 0 : i32
    %c0_i32_0 = arith.constant 0 : i32
    %c0_i32_1 = arith.constant 0 : i32
    return %c0_i32, %c0_i32_0 : i32, i32
  }
  func.func @transform_14(%arg0: i32) -> (i32, i32, i32) {
    %c0_i32 = arith.constant 0 : i32
    %c0_i32_0 = arith.constant 0 : i32
    %c0_i32_1 = arith.constant 0 : i32
    return %c0_i32, %arg0, %c0_i32_0 : i32, i32, i32
  }
}

</mosaic_0001>

<llo_original>
// kernel: wavelet_mask_forward.1
$region0: #{wavelet_mask_forward.1}
  #allocation0 [shape = 'u32[]', space=smem, size = 0x4, offset = 0x4, fixed_abs, tag = 'smem constant byte address 0x4 - core index']
  #allocation1 [shape = 'u32[144,128]{1,0:T(1,128)}', space=vmem, size = 0x12000, scoped, tag = 'internal scratch']
  %s0 = inlined_call_operand.vmem [shape: f32[2,8,32], index: 0, kind: input, shape index: {}]
  %s1 = inlined_call_operand.vmem [shape: f32[32,32], index: 1, kind: input, shape index: {}]
  %s2 = inlined_call_operand.vmem [shape: f32[32,192], index: 2, kind: input, shape index: {}]
  %s3 = inlined_call_operand.vmem [shape: f32[64,192], index: 3, kind: input, shape index: {}]
  %s4 = inlined_call_operand.vmem [shape: f32[1,192], index: 4, kind: input, shape index: {}]
  %s5 = inlined_call_operand.vmem [shape: f32[1,64], index: 5, kind: input, shape index: {}]
  %s6 = inlined_call_operand.vmem [shape: f32[64,192], index: 6, kind: input, shape index: {}]
  %s7 = inlined_call_operand.vmem [shape: f32[64,192], index: 7, kind: input, shape index: {}]
  %s8 = inlined_call_operand.vmem [shape: f32[1,192], index: 8, kind: input, shape index: {}]
  %s9 = inlined_call_operand.vmem [shape: f32[1,64], index: 9, kind: input, shape index: {}]
  %s10 = inlined_call_operand.vmem [shape: f32[32,256], index: 10, kind: input, shape index: {}]
  %s11 = inlined_call_operand.vmem [shape: f32[64,128], index: 11, kind: input, shape index: {}]
  %s12 = inlined_call_operand.vmem [shape: f32[1,128], index: 12, kind: input, shape index: {}]
  %s13 = inlined_call_operand.vmem [shape: f32[1,128], index: 13, kind: input, shape index: {}]
  %s14 = inlined_call_operand.vmem [shape: f32[2,8,128], index: 14, kind: output, shape index: {}]
  %s15 = sld [smem:[#allocation0]]
  $region66: #{wavelet_mask_forward.1} parent=0
    _
  %s17 = ssub.s32 1, %s15
  %s18 = scalar_select 0, %s17, %s15
  // Predicated region
  $region2: #{wavelet_mask_forward.1} parent=0 // pred_check
    _
  $region3: #{wavelet_mask_forward.1} parent=0 // pred_check_branch
    %20 = sbr.rel (0) target = $region5
  $region4: #{wavelet_mask_forward.1} parent=0 // pred_region
    _
  $region5: #{wavelet_mask_forward.1} parent=0 // pred_fallthru
    _
  // Predicated region
  $region6: #{wavelet_mask_forward.1} parent=0 // pred_check
    _
  $region7: #{wavelet_mask_forward.1} parent=0 // pred_check_branch
    %22 = sbr.rel (0) target = $region9
  $region8: #{wavelet_mask_forward.1} parent=0 // pred_region
    _
  $region9: #{wavelet_mask_forward.1} parent=0 // pred_fallthru
    _
  // Predicated region
  $region10: #{wavelet_mask_forward.1} parent=0 // pred_check
    _
  $region11: #{wavelet_mask_forward.1} parent=0 // pred_check_branch
    %24 = sbr.rel (0) target = $region13
  $region12: #{wavelet_mask_forward.1} parent=0 // pred_region
    _
  $region13: #{wavelet_mask_forward.1} parent=0 // pred_fallthru
    _
  // Predicated region
  $region14: #{wavelet_mask_forward.1} parent=0 // pred_check
    _
  $region15: #{wavelet_mask_forward.1} parent=0 // pred_check_branch
    %26 = sbr.rel (0) target = $region17
  $region16: #{wavelet_mask_forward.1} parent=0 // pred_region
    _
  $region17: #{wavelet_mask_forward.1} parent=0 // pred_fallthru
    _
  // Predicated region
  $region18: #{wavelet_mask_forward.1} parent=0 // pred_check
    _
  $region19: #{wavelet_mask_forward.1} parent=0 // pred_check_branch
    %28 = sbr.rel (0) target = $region21
  $region20: #{wavelet_mask_forward.1} parent=0 // pred_region
    _
  $region21: #{wavelet_mask_forward.1} parent=0 // pred_fallthru
    _
  // Predicated region
  $region22: #{wavelet_mask_forward.1} parent=0 // pred_check
    _
  $region23: #{wavelet_mask_forward.1} parent=0 // pred_check_branch
    %30 = sbr.rel (0) target = $region25
  $region24: #{wavelet_mask_forward.1} parent=0 // pred_region
    _
  $region25: #{wavelet_mask_forward.1} parent=0 // pred_fallthru
    _
  // Predicated region
  $region26: #{wavelet_mask_forward.1} parent=0 // pred_check
    _
  $region27: #{wavelet_mask_forward.1} parent=0 // pred_check_branch
    %32 = sbr.rel (0) target = $region29
  $region28: #{wavelet_mask_forward.1} parent=0 // pred_region
    _
  $region29: #{wavelet_mask_forward.1} parent=0 // pred_fallthru
    _
  // Predicated region
  $region30: #{wavelet_mask_forward.1} parent=0 // pred_check
    _
  $region31: #{wavelet_mask_forward.1} parent=0 // pred_check_branch
    %34 = sbr.rel (0) target = $region33
  $region32: #{wavelet_mask_forward.1} parent=0 // pred_region
    _
  $region33: #{wavelet_mask_forward.1} parent=0 // pred_fallthru
    _
  // Predicated region
  $region34: #{wavelet_mask_forward.1} parent=0 // pred_check
    _
  $region35: #{wavelet_mask_forward.1} parent=0 // pred_check_branch
    %36 = sbr.rel (0) target = $region37
  $region36: #{wavelet_mask_forward.1} parent=0 // pred_region
    _
  $region37: #{wavelet_mask_forward.1} parent=0 // pred_fallthru
    _
  // Predicated region
  $region38: #{wavelet_mask_forward.1} parent=0 // pred_check
    _
  $region39: #{wavelet_mask_forward.1} parent=0 // pred_check_branch
    %38 = sbr.rel (0) target = $region41
  $region40: #{wavelet_mask_forward.1} parent=0 // pred_region
    _
  $region41: #{wavelet_mask_forward.1} parent=0 // pred_fallthru
    _
  // Predicated region
  $region42: #{wavelet_mask_forward.1} parent=0 // pred_check
    _
  $region43: #{wavelet_mask_forward.1} parent=0 // pred_check_branch
    %40 = sbr.rel (0) target = $region45
  $region44: #{wavelet_mask_forward.1} parent=0 // pred_region
    _
  $region45: #{wavelet_mask_forward.1} parent=0 // pred_fallthru
    _
  // Predicated region
  $region46: #{wavelet_mask_forward.1} parent=0 // pred_check
    _
  $region47: #{wavelet_mask_forward.1} parent=0 // pred_check_branch
    %42 = sbr.rel (0) target = $region49
  $region48: #{wavelet_mask_forward.1} parent=0 // pred_region
    _
  $region49: #{wavelet_mask_forward.1} parent=0 // pred_fallthru
    _
  // Predicated region
  $region50: #{wavelet_mask_forward.1} parent=0 // pred_check
    _
  $region51: #{wavelet_mask_forward.1} parent=0 // pred_check_branch
    %44 = sbr.rel (0) target = $region53
  $region52: #{wavelet_mask_forward.1} parent=0 // pred_region
    _
  $region53: #{wavelet_mask_forward.1} parent=0 // pred_fallthru
    _
  // Predicated region
  $region54: #{wavelet_mask_forward.1} parent=0 // pred_check
    _
  $region55: #{wavelet_mask_forward.1} parent=0 // pred_check_branch
    %46 = sbr.rel (0) target = $region57
  $region56: #{wavelet_mask_forward.1} parent=0 // pred_region
    _
  $region57: #{wavelet_mask_forward.1} parent=0 // pred_fallthru
    _
  %v47 = vld [vmem:[%s1] sm:$0xff]
  %v48 = vld [vmem:[%s1 + $0x8] sm:$0xff]
  %v49 = vld [vmem:[%s1 + $0x10] sm:$0xff]
  %v50 = vld [vmem:[%s1 + $0x18] sm:$0xff]
  %v51 = vld [vmem:[%s2] sm:$0xff]
  %v52 = vld [vmem:[%s2 + $0x8] sm:$0xff]
  %v53 = vld [vmem:[%s2 + $0x10] sm:$0xff]
  %v54 = vld [vmem:[%s2 + $0x18] sm:$0xff]
  %v55 = vld [vmem:[%s2 + $0x20] sm:$0xff]
  %v56 = vld [vmem:[%s2 + $0x28] sm:$0xff]
  %v57 = vld [vmem:[%s2 + $0x30] sm:$0xff]
  %v58 = vld [vmem:[%s2 + $0x38] sm:$0xff]
  %v59 = vld [vmem:[%s3] sm:$0xff]
  %v60 = vld [vmem:[%s3 + $0x8] sm:$0xff]
  %v61 = vld [vmem:[%s3 + $0x10] sm:$0xff]
  %v62 = vld [vmem:[%s3 + $0x18] sm:$0xff]
  %v63 = vld [vmem:[%s3 + $0x20] sm:$0xff]
  %v64 = vld [vmem:[%s3 + $0x28] sm:$0xff]
  %v65 = vld [vmem:[%s3 + $0x30] sm:$0xff]
  %v66 = vld [vmem:[%s3 + $0x38] sm:$0xff]
  %v67 = vld [vmem:[%s3 + $0x40] sm:$0xff]
  %v68 = vld [vmem:[%s3 + $0x48] sm:$0xff]
  %v69 = vld [vmem:[%s3 + $0x50] sm:$0xff]
  %v70 = vld [vmem:[%s3 + $0x58] sm:$0xff]
  %v71 = vld [vmem:[%s3 + $0x60] sm:$0xff]
  %v72 = vld [vmem:[%s3 + $0x68] sm:$0xff]
  %v73 = vld [vmem:[%s3 + $0x70] sm:$0xff]
  %v74 = vld [vmem:[%s3 + $0x78] sm:$0xff]
  %v75 = vld [vmem:[%s6] sm:$0xff]
  %v76 = vld [vmem:[%s6 + $0x8] sm:$0xff]
  %v77 = vld [vmem:[%s6 + $0x10] sm:$0xff]
  %v78 = vld [vmem:[%s6 + $0x18] sm:$0xff]
  %v79 = vld [vmem:[%s6 + $0x20] sm:$0xff]
  %v80 = vld [vmem:[%s6 + $0x28] sm:$0xff]
  %v81 = vld [vmem:[%s6 + $0x30] sm:$0xff]
  %v82 = vld [vmem:[%s6 + $0x38] sm:$0xff]
  %v83 = vld [vmem:[%s6 + $0x40] sm:$0xff]
  %v84 = vld [vmem:[%s6 + $0x48] sm:$0xff]
  %v85 = vld [vmem:[%s6 + $0x50] sm:$0xff]
  %v86 = vld [vmem:[%s6 + $0x58] sm:$0xff]
  %v87 = vld [vmem:[%s6 + $0x60] sm:$0xff]
  %v88 = vld [vmem:[%s6 + $0x68] sm:$0xff]
  %v89 = vld [vmem:[%s6 + $0x70] sm:$0xff]
  %v90 = vld [vmem:[%s6 + $0x78] sm:$0xff]
  %v91 = vld [vmem:[%s7] sm:$0xff]
  %v92 = vld [vmem:[%s7 + $0x8] sm:$0xff]
  %v93 = vld [vmem:[%s7 + $0x10] sm:$0xff]
  %v94 = vld [vmem:[%s7 + $0x18] sm:$0xff]
  %v95 = vld [vmem:[%s7 + $0x20] sm:$0xff]
  %v96 = vld [vmem:[%s7 + $0x28] sm:$0xff]
  %v97 = vld [vmem:[%s7 + $0x30] sm:$0xff]
  %v98 = vld [vmem:[%s7 + $0x38] sm:$0xff]
  %v99 = vld [vmem:[%s7 + $0x40] sm:$0xff]
  %v100 = vld [vmem:[%s7 + $0x48] sm:$0xff]
  %v101 = vld [vmem:[%s7 + $0x50] sm:$0xff]
  %v102 = vld [vmem:[%s7 + $0x58] sm:$0xff]
  %v103 = vld [vmem:[%s7 + $0x60] sm:$0xff]
  %v104 = vld [vmem:[%s7 + $0x68] sm:$0xff]
  %v105 = vld [vmem:[%s7 + $0x70] sm:$0xff]
  %v106 = vld [vmem:[%s7 + $0x78] sm:$0xff]
  %v107 = vld [vmem:[%s10] sm:$0xff]
  %v108 = vld [vmem:[%s10 + $0x8] sm:$0xff]
  %v109 = vld [vmem:[%s10 + $0x10] sm:$0xff]
  %v110 = vld [vmem:[%s10 + $0x18] sm:$0xff]
  %v111 = vld [vmem:[%s10 + $0x20] sm:$0xff]
  %v112 = vld [vmem:[%s10 + $0x28] sm:$0xff]
  %v113 = vld [vmem:[%s10 + $0x30] sm:$0xff]
  %v114 = vld [vmem:[%s10 + $0x38] sm:$0xff]
  %v115 = vld [vmem:[%s11] sm:$0xff]
  %v116 = vld [vmem:[%s11 + $0x8] sm:$0xff]
  %v117 = vld [vmem:[%s11 + $0x10] sm:$0xff]
  %v118 = vld [vmem:[%s11 + $0x18] sm:$0xff]
  %v119 = vld [vmem:[%s11 + $0x20] sm:$0xff]
  %v120 = vld [vmem:[%s11 + $0x28] sm:$0xff]
  %v121 = vld [vmem:[%s11 + $0x30] sm:$0xff]
  %v122 = vld [vmem:[%s11 + $0x38] sm:$0xff]
  %v123 = vld [vmem:[%s4] sm:$0x3]
  %v125 = vlaneseq
  %v126 = vshrl.u32 %v125, 7
  %v127 = vsub.s32 0, %v126
  %v128 = vrot.slane %v123, %v127
  %v129 = vlaneseq
  %v130 = vshrl.u32 %v129, 7
  %v131 = vsub.s32 1, %v130
  %v132 = vrot.slane %v123, %v131
  %v135 = vld [vmem:[%s8] sm:$0x3]
  %v137 = vlaneseq
  %v138 = vshrl.u32 %v137, 7
  %v139 = vsub.s32 0, %v138
  %v140 = vrot.slane %v135, %v139
  %v141 = vlaneseq
  %v142 = vshrl.u32 %v141, 7
  %v143 = vsub.s32 1, %v142
  %v144 = vrot.slane %v135, %v143
  %v147 = vld [vmem:[%s5] sm:$0x1]
  %v149 = vlaneseq
  %v150 = vshrl.u32 %v149, 7
  %v151 = vsub.s32 0, %v150
  %v152 = vrot.slane %v147, %v151
  %v154 = vld [vmem:[%s9] sm:$0x1]
  %v156 = vlaneseq
  %v157 = vshrl.u32 %v156, 7
  %v158 = vsub.s32 0, %v157
  %v159 = vrot.slane %v154, %v158
  %v161 = vld [vmem:[%s12] sm:$0x1]
  %v163 = vlaneseq
  %v164 = vshrl.u32 %v163, 7
  %v165 = vsub.s32 0, %v164
  %v166 = vrot.slane %v161, %v165
  %v168 = vld [vmem:[%s13] sm:$0x1]
  %v170 = vlaneseq
  %v171 = vshrl.u32 %v170, 7
  %v172 = vsub.s32 0, %v171
  %v173 = vrot.slane %v168, %v172
  %v175 = vld [vmem:[%s0] sm:$0xff]
  %vm176 = vcmask 261120
  %v178 = vsel %vm176, %v175, 0
  %180 = vmatprep.subr.mxu0 0.0
  %181 = vmatpush1.msra.mxu0 %v47
  %182 = vmatprep.subr.mxu0 0.0
  %183 = vmatpush1.msra.mxu0 %v48
  %184 = vmatprep.subr.mxu0 0.0
  %185 = vmatpush1.msra.mxu0 %v49
  %186 = vmatprep.subr.mxu0 0.0
  %187 = vmatpush1.msra.mxu0 %v50
  %188 = vmatprep.subr.mxu0 0.0
  %189 = vmatpush1.msra.mxu0 0.0
  %190 = vmatprep.subr.mxu0 0.0
  %191 = vmatpush1.msra.mxu0 0.0
  %192 = vmatprep.subr.mxu0 0.0
  %193 = vmatpush1.msra.mxu0 0.0
  %194 = vmatprep.subr.mxu0 0.0
  %195 = vmatpush1.msra.mxu0 0.0
  %196 = vmatprep.subr.mxu0 0.0
  %197 = vmatpush1.msra.mxu0 0.0
  %198 = vmatprep.subr.mxu0 0.0
  %199 = vmatpush1.msra.mxu0 0.0
  %200 = vmatprep.subr.mxu0 0.0
  %201 = vmatpush1.msra.mxu0 0.0
  %202 = vmatprep.subr.mxu0 0.0
  %203 = vmatpush1.msra.mxu0 0.0
  %204 = vmatprep.subr.mxu0 0.0
  %205 = vmatpush1.msra.mxu0 0.0
  %206 = vmatprep.subr.mxu0 0.0
  %207 = vmatpush1.msra.mxu0 0.0
  %208 = vmatprep.subr.mxu0 0.0
  %209 = vmatpush1.msra.mxu0 0.0
  %210 = vmatprep.subr.mxu0 0.0
  %211 = vmatpush1.msra.mxu0 0.0
  %212 = vmatprep.subr.mxu0 0.0
  %213 = vmatpush1.msra.mxu0 0.0
  %214 = vmatprep.subr.mxu0 0.0
  %215 = vmatpush1.msra.mxu0 0.0
  %216 = vmatprep.subr.mxu0 0.0
  %217 = vmatpush1.msra.mxu0 0.0
  %218 = vmatprep.subr.mxu0 0.0
  %219 = vmatpush1.msra.mxu0 0.0
  %220 = vmatprep.subr.mxu0 0.0
  %221 = vmatpush1.msra.mxu0 0.0
  %222 = vmatprep.subr.mxu0 0.0
  %223 = vmatpush1.msra.mxu0 0.0
  %224 = vmatprep.subr.mxu0 0.0
  %225 = vmatpush1.msra.mxu0 0.0
  %226 = vmatprep.subr.mxu0 0.0
  %227 = vmatpush1.msra.mxu0 0.0
  %228 = vmatprep.subr.mxu0 0.0
  %229 = vmatpush1.msra.mxu0 0.0
  %230 = vmatprep.subr.mxu0 0.0
  %231 = vmatpush1.msra.mxu0 0.0
  %232 = vmatprep.subr.mxu0 0.0
  %233 = vmatpush1.msra.mxu0 0.0
  %234 = vmatprep.subr.mxu0 0.0
  %235 = vmatpush1.msra.mxu0 0.0
  %236 = vmatprep.subr.mxu0 0.0
  %237 = vmatpush1.msra.mxu0 0.0
  %238 = vmatprep.subr.mxu0 0.0
  %239 = vmatpush1.msra.mxu0 0.0
  %240 = vmatprep.subr.mxu0 0.0
  %241 = vmatpush1.msra.mxu0 0.0
  %242 = vmatprep.subr.mxu0 0.0
  %243 = vmatpush1.msra.mxu0 0.0
  %244 = vmatprep.mubr.f32.mxu0 0.0
  %245 = vmatmul.mubr.f32.gmra.mrb[0].mxu0 %v178
  %v246 = vpop.f32.mrb[0].mxu0
  %v247 = vadd.f32 0.0, %v246
  %v248 = vpop.f32.mrb[0].mxu0
  %249 = vdwg.mxu0
  %v251 = vsel %vm176, %v247, 0
  %253 = vmatprep.subr.mxu0 %v108
  %254 = vmatpush1.msra.mxu0 %v107
  %255 = vmatprep.subr.mxu0 %v110
  %256 = vmatpush1.msra.mxu0 %v109
  %257 = vmatprep.subr.mxu0 %v112
  %258 = vmatpush1.msra.mxu0 %v111
  %259 = vmatprep.subr.mxu0 %v114
  %260 = vmatpush1.msra.mxu0 %v113
  %261 = vmatprep.subr.mxu0 0.0
  %262 = vmatpush1.msra.mxu0 0.0
  %263 = vmatprep.subr.mxu0 0.0
  %264 = vmatpush1.msra.mxu0 0.0
  %265 = vmatprep.subr.mxu0 0.0
  %266 = vmatpush1.msra.mxu0 0.0
  %267 = vmatprep.subr.mxu0 0.0
  %268 = vmatpush1.msra.mxu0 0.0
  %269 = vmatprep.subr.mxu0 0.0
  %270 = vmatpush1.msra.mxu0 0.0
  %271 = vmatprep.subr.mxu0 0.0
  %272 = vmatpush1.msra.mxu0 0.0
  %273 = vmatprep.subr.mxu0 0.0
  %274 = vmatpush1.msra.mxu0 0.0
  %275 = vmatprep.subr.mxu0 0.0
  %276 = vmatpush1.msra.mxu0 0.0
  %277 = vmatprep.subr.mxu0 0.0
  %278 = vmatpush1.msra.mxu0 0.0
  %279 = vmatprep.subr.mxu0 0.0
  %280 = vmatpush1.msra.mxu0 0.0
  %281 = vmatprep.subr.mxu0 0.0
  %282 = vmatpush1.msra.mxu0 0.0
  %283 = vmatprep.subr.mxu0 0.0
  %284 = vmatpush1.msra.mxu0 0.0
  %285 = vmatprep.subr.mxu0 0.0
  %286 = vmatpush1.msra.mxu0 0.0
  %287 = vmatprep.subr.mxu0 0.0
  %288 = vmatpush1.msra.mxu0 0.0
  %289 = vmatprep.subr.mxu0 0.0
  %290 = vmatpush1.msra.mxu0 0.0
  %291 = vmatprep.subr.mxu0 0.0
  %292 = vmatpush1.msra.mxu0 0.0
  %293 = vmatprep.subr.mxu0 0.0
  %294 = vmatpush1.msra.mxu0 0.0
  %295 = vmatprep.subr.mxu0 0.0
  %296 = vmatpush1.msra.mxu0 0.0
  %297 = vmatprep.subr.mxu0 0.0
  %298 = vmatpush1.msra.mxu0 0.0
  %299 = vmatprep.subr.mxu0 0.0
  %300 = vmatpush1.msra.mxu0 0.0
  %301 = vmatprep.subr.mxu0 0.0
  %302 = vmatpush1.msra.mxu0 0.0
  %303 = vmatprep.subr.mxu0 0.0
  %304 = vmatpush1.msra.mxu0 0.0
  %305 = vmatprep.subr.mxu0 0.0
  %306 = vmatpush1.msra.mxu0 0.0
  %307 = vmatprep.subr.mxu0 0.0
  %308 = vmatpush1.msra.mxu0 0.0
  %309 = vmatprep.subr.mxu0 0.0
  %310 = vmatpush1.msra.mxu0 0.0
  %311 = vmatprep.subr.mxu0 0.0
  %312 = vmatpush1.msra.mxu0 0.0
  %313 = vmatprep.subr.mxu0 0.0
  %314 = vmatpush1.msra.mxu0 0.0
  %315 = vmatprep.subr.mxu0 0.0
  %316 = vmatpush1.msra.mxu0 0.0
  %317 = vmatprep.mubr.f32.mxu0 0.0
  %318 = vmatmul.mubr.f32.gmra.mrb[0].mxu0 %v251
  %v319 = vpop.f32.mrb[0].mxu0
  %v320 = vadd.f32 0.0, %v319
  %v321 = vpop.f32.mrb[0].mxu0
  %v322 = vadd.f32 0.0, %v321
  %323 = vdwg.mxu0
  %v324 = vadd.f32 %v322, %v173
  %325 = vmatprep.subr.mxu0 %v52
  %326 = vmatpush1.msra.mxu0 %v51
  %327 = vmatprep.subr.mxu0 %v54
  %328 = vmatpush1.msra.mxu0 %v53
  %329 = vmatprep.subr.mxu0 %v56
  %330 = vmatpush1.msra.mxu0 %v55
  %331 = vmatprep.subr.mxu0 %v58
  %332 = vmatpush1.msra.mxu0 %v57
  %333 = vmatprep.subr.mxu0 0.0
  %334 = vmatpush1.msra.mxu0 0.0
  %335 = vmatprep.subr.mxu0 0.0
  %336 = vmatpush1.msra.mxu0 0.0
  %337 = vmatprep.subr.mxu0 0.0
  %338 = vmatpush1.msra.mxu0 0.0
  %339 = vmatprep.subr.mxu0 0.0
  %340 = vmatpush1.msra.mxu0 0.0
  %341 = vmatprep.subr.mxu0 0.0
  %342 = vmatpush1.msra.mxu0 0.0
  %343 = vmatprep.subr.mxu0 0.0
  %344 = vmatpush1.msra.mxu0 0.0
  %345 = vmatprep.subr.mxu0 0.0
  %346 = vmatpush1.msra.mxu0 0.0
  %347 = vmatprep.subr.mxu0 0.0
  %348 = vmatpush1.msra.mxu0 0.0
  %349 = vmatprep.subr.mxu0 0.0
  %350 = vmatpush1.msra.mxu0 0.0
  %351 = vmatprep.subr.mxu0 0.0
  %352 = vmatpush1.msra.mxu0 0.0
  %353 = vmatprep.subr.mxu0 0.0
  %354 = vmatpush1.msra.mxu0 0.0
  %355 = vmatprep.subr.mxu0 0.0
  %356 = vmatpush1.msra.mxu0 0.0
  %357 = vmatprep.subr.mxu0 0.0
  %358 = vmatpush1.msra.mxu0 0.0
  %359 = vmatprep.subr.mxu0 0.0
  %360 = vmatpush1.msra.mxu0 0.0
  %361 = vmatprep.subr.mxu0 0.0
  %362 = vmatpush1.msra.mxu0 0.0
  %363 = vmatprep.subr.mxu0 0.0
  %364 = vmatpush1.msra.mxu0 0.0
  %365 = vmatprep.subr.mxu0 0.0
  %366 = vmatpush1.msra.mxu0 0.0
  %367 = vmatprep.subr.mxu0 0.0
  %368 = vmatpush1.msra.mxu0 0.0
  %369 = vmatprep.subr.mxu0 0.0
  %370 = vmatpush1.msra.mxu0 0.0
  %371 = vmatprep.subr.mxu0 0.0
  %372 = vmatpush1.msra.mxu0 0.0
  %373 = vmatprep.subr.mxu0 0.0
  %374 = vmatpush1.msra.mxu0 0.0
  %375 = vmatprep.subr.mxu0 0.0
  %376 = vmatpush1.msra.mxu0 0.0
  %377 = vmatprep.subr.mxu0 0.0
  %378 = vmatpush1.msra.mxu0 0.0
  %379 = vmatprep.subr.mxu0 0.0
  %380 = vmatpush1.msra.mxu0 0.0
  %381 = vmatprep.subr.mxu0 0.0
  %382 = vmatpush1.msra.mxu0 0.0
  %383 = vmatprep.subr.mxu0 0.0
  %384 = vmatpush1.msra.mxu0 0.0
  %385 = vmatprep.subr.mxu0 0.0
  %386 = vmatpush1.msra.mxu0 0.0
  %387 = vmatprep.subr.mxu0 0.0
  %388 = vmatpush1.msra.mxu0 0.0
  %389 = vmatprep.mubr.f32.mxu0 0.0
  %390 = vmatmul.mubr.f32.gmra.mrb[0].mxu0 %v251
  %v391 = vpop.f32.mrb[0].mxu0
  %v392 = vadd.f32 %v128, %v391
  %v393 = vpop.f32.mrb[0].mxu0
  %v394 = vadd.f32 %v132, %v393
  %395 = vdwg.mxu0
  %vm396 = vcmask 523264
  %v398 = vsel %vm396, 0.0, 0
  %400 = vmatprep.subr.mxu0 %v60
  %401 = vmatpush1.msra.mxu0 %v59
  %402 = vmatprep.subr.mxu0 %v62
  %403 = vmatpush1.msra.mxu0 %v61
  %404 = vmatprep.subr.mxu0 %v64
  %405 = vmatpush1.msra.mxu0 %v63
  %406 = vmatprep.subr.mxu0 %v66
  %407 = vmatpush1.msra.mxu0 %v65
  %408 = vmatprep.subr.mxu0 %v68
  %409 = vmatpush1.msra.mxu0 %v67
  %410 = vmatprep.subr.mxu0 %v70
  %411 = vmatpush1.msra.mxu0 %v69
  %412 = vmatprep.subr.mxu0 %v72
  %413 = vmatpush1.msra.mxu0 %v71
  %414 = vmatprep.subr.mxu0 %v74
  %415 = vmatpush1.msra.mxu0 %v73
  %416 = vmatprep.subr.mxu0 0.0
  %417 = vmatpush1.msra.mxu0 0.0
  %418 = vmatprep.subr.mxu0 0.0
  %419 = vmatpush1.msra.mxu0 0.0
  %420 = vmatprep.subr.mxu0 0.0
  %421 = vmatpush1.msra.mxu0 0.0
  %422 = vmatprep.subr.mxu0 0.0
  %423 = vmatpush1.msra.mxu0 0.0
  %424 = vmatprep.subr.mxu0 0.0
  %425 = vmatpush1.msra.mxu0 0.0
  %426 = vmatprep.subr.mxu0 0.0
  %427 = vmatpush1.msra.mxu0 0.0
  %428 = vmatprep.subr.mxu0 0.0
  %429 = vmatpush1.msra.mxu0 0.0
  %430 = vmatprep.subr.mxu0 0.0
  %431 = vmatpush1.msra.mxu0 0.0
  %432 = vmatprep.subr.mxu0 0.0
  %433 = vmatpush1.msra.mxu0 0.0
  %434 = vmatprep.subr.mxu0 0.0
  %435 = vmatpush1.msra.mxu0 0.0
  %436 = vmatprep.subr.mxu0 0.0
  %437 = vmatpush1.msra.mxu0 0.0
  %438 = vmatprep.subr.mxu0 0.0
  %439 = vmatpush1.msra.mxu0 0.0
  %440 = vmatprep.subr.mxu0 0.0
  %441 = vmatpush1.msra.mxu0 0.0
  %442 = vmatprep.subr.mxu0 0.0
  %443 = vmatpush1.msra.mxu0 0.0
  %444 = vmatprep.subr.mxu0 0.0
  %445 = vmatpush1.msra.mxu0 0.0
  %446 = vmatprep.subr.mxu0 0.0
  %447 = vmatpush1.msra.mxu0 0.0
  %448 = vmatprep.subr.mxu0 0.0
  %449 = vmatpush1.msra.mxu0 0.0
  %450 = vmatprep.subr.mxu0 0.0
  %451 = vmatpush1.msra.mxu0 0.0
  %452 = vmatprep.subr.mxu0 0.0
  %453 = vmatpush1.msra.mxu0 0.0
  %454 = vmatprep.subr.mxu0 0.0
  %455 = vmatpush1.msra.mxu0 0.0
  %456 = vmatprep.subr.mxu0 0.0
  %457 = vmatpush1.msra.mxu0 0.0
  %458 = vmatprep.subr.mxu0 0.0
  %459 = vmatpush1.msra.mxu0 0.0
  %460 = vmatprep.subr.mxu0 0.0
  %461 = vmatpush1.msra.mxu0 0.0
  %462 = vmatprep.subr.mxu0 0.0
  %463 = vmatpush1.msra.mxu0 0.0
  %464 = vmatprep.mubr.f32.mxu0 0.0
  %465 = vmatmul.mubr.f32.gmra.mrb[0].mxu0 %v398
  %v466 = vpop.f32.mrb[0].mxu0
  %v467 = vadd.f32 0.0, %v466
  %v468 = vpop.f32.mrb[0].mxu0
  %v469 = vadd.f32 0.0, %v468
  %470 = vdwg.mxu0
  %v471 = vadd.f32 %v392, %v467
  %v472 = vxor.u32 %v471, 2147483648
  %v473 = vmul.f32 %v472, 1.442695
  %v474 = vpow.pop %v473
  %v475 = vadd.f32 %v474, 1.0
  %v476 = vrcp.pop %v475
  %v477 = vmul.f32 1.0, %v476
  %v478 = vadd.f32 %v469, %v152
  %v479 = vmul.f32 %v477, %v478
  %v480 = vadd.f32 %v394, %v479
  %v481 = vtanh.pop %v480
  %v482 = vsub.f32 1.0, %v477
  %484 = vrot.lane.b32.xlu0 %v481, 64
  %v485 = vpop.permute.xlu0 %484
  %v487 = vmul.f32 %v482, %v485
  %v488 = vmul.f32 %v477, 0.0
  %v489 = vadd.f32 %v487, %v488
  %491 = vrot.lane.b32.xlu0 %v489, 64
  %v492 = vpop.permute.xlu0 %491
  %v493 = vsel %vm396, %v492, 0
  %495 = vmatprep.subr.mxu0 %v76
  %496 = vmatpush1.msra.mxu0 %v75
  %497 = vmatprep.subr.mxu0 %v78
  %498 = vmatpush1.msra.mxu0 %v77
  %499 = vmatprep.subr.mxu0 %v80
  %500 = vmatpush1.msra.mxu0 %v79
  %501 = vmatprep.subr.mxu0 %v82
  %502 = vmatpush1.msra.mxu0 %v81
  %503 = vmatprep.subr.mxu0 %v84
  %504 = vmatpush1.msra.mxu0 %v83
  %505 = vmatprep.subr.mxu0 %v86
  %506 = vmatpush1.msra.mxu0 %v85
  %507 = vmatprep.subr.mxu0 %v88
  %508 = vmatpush1.msra.mxu0 %v87
  %509 = vmatprep.subr.mxu0 %v90
  %510 = vmatpush1.msra.mxu0 %v89
  %511 = vmatprep.subr.mxu0 0.0
  %512 = vmatpush1.msra.mxu0 0.0
  %513 = vmatprep.subr.mxu0 0.0
  %514 = vmatpush1.msra.mxu0 0.0
  %515 = vmatprep.subr.mxu0 0.0
  %516 = vmatpush1.msra.mxu0 0.0
  %517 = vmatprep.subr.mxu0 0.0
  %518 = vmatpush1.msra.mxu0 0.0
  %519 = vmatprep.subr.mxu0 0.0
  %520 = vmatpush1.msra.mxu0 0.0
  %521 = vmatprep.subr.mxu0 0.0
  %522 = vmatpush1.msra.mxu0 0.0
  %523 = vmatprep.subr.mxu0 0.0
  %524 = vmatpush1.msra.mxu0 0.0
  %525 = vmatprep.subr.mxu0 0.0
  %526 = vmatpush1.msra.mxu0 0.0
  %527 = vmatprep.subr.mxu0 0.0
  %528 = vmatpush1.msra.mxu0 0.0
  %529 = vmatprep.subr.mxu0 0.0
  %530 = vmatpush1.msra.mxu0 0.0
  %531 = vmatprep.subr.mxu0 0.0
  %532 = vmatpush1.msra.mxu0 0.0
  %533 = vmatprep.subr.mxu0 0.0
  %534 = vmatpush1.msra.mxu0 0.0
  %535 = vmatprep.subr.mxu0 0.0
  %536 = vmatpush1.msra.mxu0 0.0
  %537 = vmatprep.subr.mxu0 0.0
  %538 = vmatpush1.msra.mxu0 0.0
  %539 = vmatprep.subr.mxu0 0.0
  %540 = vmatpush1.msra.mxu0 0.0
  %541 = vmatprep.subr.mxu0 0.0
  %542 = vmatpush1.msra.mxu0 0.0
  %543 = vmatprep.subr.mxu0 0.0
  %544 = vmatpush1.msra.mxu0 0.0
  %545 = vmatprep.subr.mxu0 0.0
  %546 = vmatpush1.msra.mxu0 0.0
  %547 = vmatprep.subr.mxu0 0.0
  %548 = vmatpush1.msra.mxu0 0.0
  %549 = vmatprep.subr.mxu0 0.0
  %550 = vmatpush1.msra.mxu0 0.0
  %551 = vmatprep.subr.mxu0 0.0
  %552 = vmatpush1.msra.mxu0 0.0
  %553 = vmatprep.subr.mxu0 0.0
  %554 = vmatpush1.msra.mxu0 0.0
  %555 = vmatprep.subr.mxu0 0.0
  %556 = vmatpush1.msra.mxu0 0.0
  %557 = vmatprep.subr.mxu0 0.0
  %558 = vmatpush1.msra.mxu0 0.0
  %559 = vmatprep.mubr.f32.mxu0 0.0
  %560 = vmatmul.mubr.f32.gmra.mrb[0].mxu0 %v493
  %v561 = vpop.f32.mrb[0].mxu0
  %v562 = vadd.f32 %v140, %v561
  %v563 = vpop.f32.mrb[0].mxu0
  %v564 = vadd.f32 %v144, %v563
  %565 = vdwg.mxu0
  %566 = vmatprep.subr.mxu0 %v92
  %567 = vmatpush1.msra.mxu0 %v91
  %568 = vmatprep.subr.mxu0 %v94
  %569 = vmatpush1.msra.mxu0 %v93
  %570 = vmatprep.subr.mxu0 %v96
  %571 = vmatpush1.msra.mxu0 %v95
  %572 = vmatprep.subr.mxu0 %v98
  %573 = vmatpush1.msra.mxu0 %v97
  %574 = vmatprep.subr.mxu0 %v100
  %575 = vmatpush1.msra.mxu0 %v99
  %576 = vmatprep.subr.mxu0 %v102
  %577 = vmatpush1.msra.mxu0 %v101
  %578 = vmatprep.subr.mxu0 %v104
  %579 = vmatpush1.msra.mxu0 %v103
  %580 = vmatprep.subr.mxu0 %v106
  %581 = vmatpush1.msra.mxu0 %v105
  %582 = vmatprep.subr.mxu0 0.0
  %583 = vmatpush1.msra.mxu0 0.0
  %584 = vmatprep.subr.mxu0 0.0
  %585 = vmatpush1.msra.mxu0 0.0
  %586 = vmatprep.subr.mxu0 0.0
  %587 = vmatpush1.msra.mxu0 0.0
  %588 = vmatprep.subr.mxu0 0.0
  %589 = vmatpush1.msra.mxu0 0.0
  %590 = vmatprep.subr.mxu0 0.0
  %591 = vmatpush1.msra.mxu0 0.0
  %592 = vmatprep.subr.mxu0 0.0
  %593 = vmatpush1.msra.mxu0 0.0
  %594 = vmatprep.subr.mxu0 0.0
  %595 = vmatpush1.msra.mxu0 0.0
  %596 = vmatprep.subr.mxu0 0.0
  %597 = vmatpush1.msra.mxu0 0.0
  %598 = vmatprep.subr.mxu0 0.0
  %599 = vmatpush1.msra.mxu0 0.0
  %600 = vmatprep.subr.mxu0 0.0
  %601 = vmatpush1.msra.mxu0 0.0
  %602 = vmatprep.subr.mxu0 0.0
  %603 = vmatpush1.msra.mxu0 0.0
  %604 = vmatprep.subr.mxu0 0.0
  %605 = vmatpush1.msra.mxu0 0.0
  %606 = vmatprep.subr.mxu0 0.0
  %607 = vmatpush1.msra.mxu0 0.0
  %608 = vmatprep.subr.mxu0 0.0
  %609 = vmatpush1.msra.mxu0 0.0
  %610 = vmatprep.subr.mxu0 0.0
  %611 = vmatpush1.msra.mxu0 0.0
  %612 = vmatprep.subr.mxu0 0.0
  %613 = vmatpush1.msra.mxu0 0.0
  %614 = vmatprep.subr.mxu0 0.0
  %615 = vmatpush1.msra.mxu0 0.0
  %616 = vmatprep.subr.mxu0 0.0
  %617 = vmatpush1.msra.mxu0 0.0
  %618 = vmatprep.subr.mxu0 0.0
  %619 = vmatpush1.msra.mxu0 0.0
  %620 = vmatprep.subr.mxu0 0.0
  %621 = vmatpush1.msra.mxu0 0.0
  %622 = vmatprep.subr.mxu0 0.0
  %623 = vmatpush1.msra.mxu0 0.0
  %624 = vmatprep.subr.mxu0 0.0
  %625 = vmatpush1.msra.mxu0 0.0
  %626 = vmatprep.subr.mxu0 0.0
  %627 = vmatpush1.msra.mxu0 0.0
  %628 = vmatprep.subr.mxu0 0.0
  %629 = vmatpush1.msra.mxu0 0.0
  %630 = vmatprep.mubr.f32.mxu0 0.0
  %631 = vmatmul.mubr.f32.gmra.mrb[0].mxu0 %v398
  %v632 = vpop.f32.mrb[0].mxu0
  %v633 = vadd.f32 0.0, %v632
  %v634 = vpop.f32.mrb[0].mxu0
  %v635 = vadd.f32 0.0, %v634
  %636 = vdwg.mxu0
  %v637 = vadd.f32 %v562, %v633
  %v638 = vxor.u32 %v637, 2147483648
  %v639 = vmul.f32 %v638, 1.442695
  %v640 = vpow.pop %v639
  %v641 = vadd.f32 %v640, 1.0
  %v642 = vrcp.pop %v641
  %v643 = vmul.f32 1.0, %v642
  %v644 = vadd.f32 %v635, %v159
  %v645 = vmul.f32 %v643, %v644
  %v646 = vadd.f32 %v564, %v645
  %v647 = vtanh.pop %v646
  %v648 = vsub.f32 1.0, %v643
  %650 = vrot.lane.b32.xlu0 %v647, 64
  %v651 = vpop.permute.xlu0 %650
  %v653 = vmul.f32 %v648, %v651
  %v654 = vmul.f32 %v643, 0.0
  %v655 = vadd.f32 %v653, %v654
  %657 = vrot.lane.b32.xlu0 %v655, 64
  %v658 = vpop.permute.xlu0 %657
  %v659 = vsel %vm396, %v658, 0
  %661 = vmatprep.subr.mxu0 0.0
  %662 = vmatpush1.msra.mxu0 %v115
  %663 = vmatprep.subr.mxu0 0.0
  %664 = vmatpush1.msra.mxu0 %v116
  %665 = vmatprep.subr.mxu0 0.0
  %666 = vmatpush1.msra.mxu0 %v117
  %667 = vmatprep.subr.mxu0 0.0
  %668 = vmatpush1.msra.mxu0 %v118
  %669 = vmatprep.subr.mxu0 0.0
  %670 = vmatpush1.msra.mxu0 %v119
  %671 = vmatprep.subr.mxu0 0.0
  %672 = vmatpush1.msra.mxu0 %v120
  %673 = vmatprep.subr.mxu0 0.0
  %674 = vmatpush1.msra.mxu0 %v121
  %675 = vmatprep.subr.mxu0 0.0
  %676 = vmatpush1.msra.mxu0 %v122
  %677 = vmatprep.subr.mxu0 0.0
  %678 = vmatpush1.msra.mxu0 0.0
  %679 = vmatprep.subr.mxu0 0.0
  %680 = vmatpush1.msra.mxu0 0.0
  %681 = vmatprep.subr.mxu0 0.0
  %682 = vmatpush1.msra.mxu0 0.0
  %683 = vmatprep.subr.mxu0 0.0
  %684 = vmatpush1.msra.mxu0 0.0
  %685 = vmatprep.subr.mxu0 0.0
  %686 = vmatpush1.msra.mxu0 0.0
  %687 = vmatprep.subr.mxu0 0.0
  %688 = vmatpush1.msra.mxu0 0.0
  %689 = vmatprep.subr.mxu0 0.0
  %690 = vmatpush1.msra.mxu0 0.0
  %691 = vmatprep.subr.mxu0 0.0
  %692 = vmatpush1.msra.mxu0 0.0
  %693 = vmatprep.subr.mxu0 0.0
  %694 = vmatpush1.msra.mxu0 0.0
  %695 = vmatprep.subr.mxu0 0.0
  %696 = vmatpush1.msra.mxu0 0.0
  %697 = vmatprep.subr.mxu0 0.0
  %698 = vmatpush1.msra.mxu0 0.0
  %699 = vmatprep.subr.mxu0 0.0
  %700 = vmatpush1.msra.mxu0 0.0
  %701 = vmatprep.subr.mxu0 0.0
  %702 = vmatpush1.msra.mxu0 0.0
  %703 = vmatprep.subr.mxu0 0.0
  %704 = vmatpush1.msra.mxu0 0.0
  %705 = vmatprep.subr.mxu0 0.0
  %706 = vmatpush1.msra.mxu0 0.0
  %707 = vmatprep.subr.mxu0 0.0
  %708 = vmatpush1.msra.mxu0 0.0
  %709 = vmatprep.subr.mxu0 0.0
  %710 = vmatpush1.msra.mxu0 0.0
  %711 = vmatprep.subr.mxu0 0.0
  %712 = vmatpush1.msra.mxu0 0.0
  %713 = vmatprep.subr.mxu0 0.0
  %714 = vmatpush1.msra.mxu0 0.0
  %715 = vmatprep.subr.mxu0 0.0
  %716 = vmatpush1.msra.mxu0 0.0
  %717 = vmatprep.subr.mxu0 0.0
  %718 = vmatpush1.msra.mxu0 0.0
  %719 = vmatprep.subr.mxu0 0.0
  %720 = vmatpush1.msra.mxu0 0.0
  %721 = vmatprep.subr.mxu0 0.0
  %722 = vmatpush1.msra.mxu0 0.0
  %723 = vmatprep.subr.mxu0 0.0
  %724 = vmatpush1.msra.mxu0 0.0
  %725 = vmatprep.mubr.f32.mxu0 0.0
  %726 = vmatmul.mubr.f32.gmra.mrb[0].mxu0 %v659
  %v727 = vpop.f32.mrb[0].mxu0
  %v728 = vadd.f32 %v166, %v727
  %v729 = vpop.f32.mrb[0].mxu0
  %730 = vdwg.mxu0
  %v731 = vxor.u32 %v728, 2147483648
  %v732 = vmul.f32 %v731, 1.442695
  %v733 = vpow.pop %v732
  %v734 = vadd.f32 %v733, 1.0
  %v735 = vrcp.pop %v734
  %v736 = vmul.f32 1.0, %v735
  %v737 = vmul.f32 %v736, %v324
  %v738 = vadd.f32 %v320, %v737
  %739 = vst [vmem:[%s14] sm:$0xff] %v738
  %s740 = scalar_lea.vmem %s0, 8
  %v741 = vld [vmem:[%s740] sm:$0xff]
  %v743 = vsel %vm176, %v741, 0
  %745 = vmatprep.subr.mxu0 0.0
  %746 = vmatpush1.msra.mxu0 %v47
  %747 = vmatprep.subr.mxu0 0.0
  %748 = vmatpush1.msra.mxu0 %v48
  %749 = vmatprep.subr.mxu0 0.0
  %750 = vmatpush1.msra.mxu0 %v49
  %751 = vmatprep.subr.mxu0 0.0
  %752 = vmatpush1.msra.mxu0 %v50
  %753 = vmatprep.subr.mxu0 0.0
  %754 = vmatpush1.msra.mxu0 0.0
  %755 = vmatprep.subr.mxu0 0.0
  %756 = vmatpush1.msra.mxu0 0.0
  %757 = vmatprep.subr.mxu0 0.0
  %758 = vmatpush1.msra.mxu0 0.0
  %759 = vmatprep.subr.mxu0 0.0
  %760 = vmatpush1.msra.mxu0 0.0
  %761 = vmatprep.subr.mxu0 0.0
  %762 = vmatpush1.msra.mxu0 0.0
  %763 = vmatprep.subr.mxu0 0.0
  %764 = vmatpush1.msra.mxu0 0.0
  %765 = vmatprep.subr.mxu0 0.0
  %766 = vmatpush1.msra.mxu0 0.0
  %767 = vmatprep.subr.mxu0 0.0
  %768 = vmatpush1.msra.mxu0 0.0
  %769 = vmatprep.subr.mxu0 0.0
  %770 = vmatpush1.msra.mxu0 0.0
  %771 = vmatprep.subr.mxu0 0.0
  %772 = vmatpush1.msra.mxu0 0.0
  %773 = vmatprep.subr.mxu0 0.0
  %774 = vmatpush1.msra.mxu0 0.0
  %775 = vmatprep.subr.mxu0 0.0
  %776 = vmatpush1.msra.mxu0 0.0
  %777 = vmatprep.subr.mxu0 0.0
  %778 = vmatpush1.msra.mxu0 0.0
  %779 = vmatprep.subr.mxu0 0.0
  %780 = vmatpush1.msra.mxu0 0.0
  %781 = vmatprep.subr.mxu0 0.0
  %782 = vmatpush1.msra.mxu0 0.0
  %783 = vmatprep.subr.mxu0 0.0
  %784 = vmatpush1.msra.mxu0 0.0
  %785 = vmatprep.subr.mxu0 0.0
  %786 = vmatpush1.msra.mxu0 0.0
  %787 = vmatprep.subr.mxu0 0.0
  %788 = vmatpush1.msra.mxu0 0.0
  %789 = vmatprep.subr.mxu0 0.0
  %790 = vmatpush1.msra.mxu0 0.0
  %791 = vmatprep.subr.mxu0 0.0
  %792 = vmatpush1.msra.mxu0 0.0
  %793 = vmatprep.subr.mxu0 0.0
  %794 = vmatpush1.msra.mxu0 0.0
  %795 = vmatprep.subr.mxu0 0.0
  %796 = vmatpush1.msra.mxu0 0.0
  %797 = vmatprep.subr.mxu0 0.0
  %798 = vmatpush1.msra.mxu0 0.0
  %799 = vmatprep.subr.mxu0 0.0
  %800 = vmatpush1.msra.mxu0 0.0
  %801 = vmatprep.subr.mxu0 0.0
  %802 = vmatpush1.msra.mxu0 0.0
  %803 = vmatprep.subr.mxu0 0.0
  %804 = vmatpush1.msra.mxu0 0.0
  %805 = vmatprep.subr.mxu0 0.0
  %806 = vmatpush1.msra.mxu0 0.0
  %807 = vmatprep.subr.mxu0 0.0
  %808 = vmatpush1.msra.mxu0 0.0
  %809 = vmatprep.mubr.f32.mxu0 0.0
  %810 = vmatmul.mubr.f32.gmra.mrb[0].mxu0 %v743
  %v811 = vpop.f32.mrb[0].mxu0
  %v812 = vadd.f32 0.0, %v811
  %v813 = vpop.f32.mrb[0].mxu0
  %814 = vdwg.mxu0
  %v816 = vsel %vm176, %v812, 0
  %818 = vmatprep.subr.mxu0 %v108
  %819 = vmatpush1.msra.mxu0 %v107
  %820 = vmatprep.subr.mxu0 %v110
  %821 = vmatpush1.msra.mxu0 %v109
  %822 = vmatprep.subr.mxu0 %v112
  %823 = vmatpush1.msra.mxu0 %v111
  %824 = vmatprep.subr.mxu0 %v114
  %825 = vmatpush1.msra.mxu0 %v113
  %826 = vmatprep.subr.mxu0 0.0
  %827 = vmatpush1.msra.mxu0 0.0
  %828 = vmatprep.subr.mxu0 0.0
  %829 = vmatpush1.msra.mxu0 0.0
  %830 = vmatprep.subr.mxu0 0.0
  %831 = vmatpush1.msra.mxu0 0.0
  %832 = vmatprep.subr.mxu0 0.0
  %833 = vmatpush1.msra.mxu0 0.0
  %834 = vmatprep.subr.mxu0 0.0
  %835 = vmatpush1.msra.mxu0 0.0
  %836 = vmatprep.subr.mxu0 0.0
  %837 = vmatpush1.msra.mxu0 0.0
  %838 = vmatprep.subr.mxu0 0.0
  %839 = vmatpush1.msra.mxu0 0.0
  %840 = vmatprep.subr.mxu0 0.0
  %841 = vmatpush1.msra.mxu0 0.0
  %842 = vmatprep.subr.mxu0 0.0
  %843 = vmatpush1.msra.mxu0 0.0
  %844 = vmatprep.subr.mxu0 0.0
  %845 = vmatpush1.msra.mxu0 0.0
  %846 = vmatprep.subr.mxu0 0.0
  %847 = vmatpush1.msra.mxu0 0.0
  %848 = vmatprep.subr.mxu0 0.0
  %849 = vmatpush1.msra.mxu0 0.0
  %850 = vmatprep.subr.mxu0 0.0
  %851 = vmatpush1.msra.mxu0 0.0
  %852 = vmatprep.subr.mxu0 0.0
  %853 = vmatpush1.msra.mxu0 0.0
  %854 = vmatprep.subr.mxu0 0.0
  %855 = vmatpush1.msra.mxu0 0.0
  %856 = vmatprep.subr.mxu0 0.0
  %857 = vmatpush1.msra.mxu0 0.0
  %858 = vmatprep.subr.mxu0 0.0
  %859 = vmatpush1.msra.mxu0 0.0
  %860 = vmatprep.subr.mxu0 0.0
  %861 = vmatpush1.msra.mxu0 0.0
  %862 = vmatprep.subr.mxu0 0.0
  %863 = vmatpush1.msra.mxu0 0.0
  %864 = vmatprep.subr.mxu0 0.0
  %865 = vmatpush1.msra.mxu0 0.0
  %866 = vmatprep.subr.mxu0 0.0
  %867 = vmatpush1.msra.mxu0 0.0
  %868 = vmatprep.subr.mxu0 0.0
  %869 = vmatpush1.msra.mxu0 0.0
  %870 = vmatprep.subr.mxu0 0.0
  %871 = vmatpush1.msra.mxu0 0.0
  %872 = vmatprep.subr.mxu0 0.0
  %873 = vmatpush1.msra.mxu0 0.0
  %874 = vmatprep.subr.mxu0 0.0
  %875 = vmatpush1.msra.mxu0 0.0
  %876 = vmatprep.subr.mxu0 0.0
  %877 = vmatpush1.msra.mxu0 0.0
  %878 = vmatprep.subr.mxu0 0.0
  %879 = vmatpush1.msra.mxu0 0.0
  %880 = vmatprep.subr.mxu0 0.0
  %881 = vmatpush1.msra.mxu0 0.0
  %882 = vmatprep.mubr.f32.mxu0 0.0
  %883 = vmatmul.mubr.f32.gmra.mrb[0].mxu0 %v816
  %v884 = vpop.f32.mrb[0].mxu0
  %v885 = vadd.f32 0.0, %v884
  %v886 = vpop.f32.mrb[0].mxu0
  %v887 = vadd.f32 0.0, %v886
  %888 = vdwg.mxu0
  %v889 = vadd.f32 %v887, %v173
  %890 = vmatprep.subr.mxu0 %v52
  %891 = vmatpush1.msra.mxu0 %v51
  %892 = vmatprep.subr.mxu0 %v54
  %893 = vmatpush1.msra.mxu0 %v53
  %894 = vmatprep.subr.mxu0 %v56
  %895 = vmatpush1.msra.mxu0 %v55
  %896 = vmatprep.subr.mxu0 %v58
  %897 = vmatpush1.msra.mxu0 %v57
  %898 = vmatprep.subr.mxu0 0.0
  %899 = vmatpush1.msra.mxu0 0.0
  %900 = vmatprep.subr.mxu0 0.0
  %901 = vmatpush1.msra.mxu0 0.0
  %902 = vmatprep.subr.mxu0 0.0
  %903 = vmatpush1.msra.mxu0 0.0
  %904 = vmatprep.subr.mxu0 0.0
  %905 = vmatpush1.msra.mxu0 0.0
  %906 = vmatprep.subr.mxu0 0.0
  %907 = vmatpush1.msra.mxu0 0.0
  %908 = vmatprep.subr.mxu0 0.0
  %909 = vmatpush1.msra.mxu0 0.0
  %910 = vmatprep.subr.mxu0 0.0
  %911 = vmatpush1.msra.mxu0 0.0
  %912 = vmatprep.subr.mxu0 0.0
  %913 = vmatpush1.msra.mxu0 0.0
  %914 = vmatprep.subr.mxu0 0.0
  %915 = vmatpush1.msra.mxu0 0.0
  %916 = vmatprep.subr.mxu0 0.0
  %917 = vmatpush1.msra.mxu0 0.0
  %918 = vmatprep.subr.mxu0 0.0
  %919 = vmatpush1.msra.mxu0 0.0
  %920 = vmatprep.subr.mxu0 0.0
  %921 = vmatpush1.msra.mxu0 0.0
  %922 = vmatprep.subr.mxu0 0.0
  %923 = vmatpush1.msra.mxu0 0.0
  %924 = vmatprep.subr.mxu0 0.0
  %925 = vmatpush1.msra.mxu0 0.0
  %926 = vmatprep.subr.mxu0 0.0
  %927 = vmatpush1.msra.mxu0 0.0
  %928 = vmatprep.subr.mxu0 0.0
  %929 = vmatpush1.msra.mxu0 0.0
  %930 = vmatprep.subr.mxu0 0.0
  %931 = vmatpush1.msra.mxu0 0.0
  %932 = vmatprep.subr.mxu0 0.0
  %933 = vmatpush1.msra.mxu0 0.0
  %934 = vmatprep.subr.mxu0 0.0
  %935 = vmatpush1.msra.mxu0 0.0
  %936 = vmatprep.subr.mxu0 0.0
  %937 = vmatpush1.msra.mxu0 0.0
  %938 = vmatprep.subr.mxu0 0.0
  %939 = vmatpush1.msra.mxu0 0.0
  %940 = vmatprep.subr.mxu0 0.0
  %941 = vmatpush1.msra.mxu0 0.0
  %942 = vmatprep.subr.mxu0 0.0
  %943 = vmatpush1.msra.mxu0 0.0
  %944 = vmatprep.subr.mxu0 0.0
  %945 = vmatpush1.msra.mxu0 0.0
  %946 = vmatprep.subr.mxu0 0.0
  %947 = vmatpush1.msra.mxu0 0.0
  %948 = vmatprep.subr.mxu0 0.0
  %949 = vmatpush1.msra.mxu0 0.0
  %950 = vmatprep.subr.mxu0 0.0
  %951 = vmatpush1.msra.mxu0 0.0
  %952 = vmatprep.subr.mxu0 0.0
  %953 = vmatpush1.msra.mxu0 0.0
  %954 = vmatprep.mubr.f32.mxu0 0.0
  %955 = vmatmul.mubr.f32.gmra.mrb[0].mxu0 %v816
  %v956 = vpop.f32.mrb[0].mxu0
  %v957 = vadd.f32 %v128, %v956
  %v958 = vpop.f32.mrb[0].mxu0
  %v959 = vadd.f32 %v132, %v958
  %960 = vdwg.mxu0
  %961 = vmatprep.subr.mxu0 %v60
  %962 = vmatpush1.msra.mxu0 %v59
  %963 = vmatprep.subr.mxu0 %v62
  %964 = vmatpush1.msra.mxu0 %v61
  %965 = vmatprep.subr.mxu0 %v64
  %966 = vmatpush1.msra.mxu0 %v63
  %967 = vmatprep.subr.mxu0 %v66
  %968 = vmatpush1.msra.mxu0 %v65
  %969 = vmatprep.subr.mxu0 %v68
  %970 = vmatpush1.msra.mxu0 %v67
  %971 = vmatprep.subr.mxu0 %v70
  %972 = vmatpush1.msra.mxu0 %v69
  %973 = vmatprep.subr.mxu0 %v72
  %974 = vmatpush1.msra.mxu0 %v71
  %975 = vmatprep.subr.mxu0 %v74
  %976 = vmatpush1.msra.mxu0 %v73
  %977 = vmatprep.subr.mxu0 0.0
  %978 = vmatpush1.msra.mxu0 0.0
  %979 = vmatprep.subr.mxu0 0.0
  %980 = vmatpush1.msra.mxu0 0.0
  %981 = vmatprep.subr.mxu0 0.0
  %982 = vmatpush1.msra.mxu0 0.0
  %983 = vmatprep.subr.mxu0 0.0
  %984 = vmatpush1.msra.mxu0 0.0
  %985 = vmatprep.subr.mxu0 0.0
  %986 = vmatpush1.msra.mxu0 0.0
  %987 = vmatprep.subr.mxu0 0.0
  %988 = vmatpush1.msra.mxu0 0.0
  %989 = vmatprep.subr.mxu0 0.0
  %990 = vmatpush1.msra.mxu0 0.0
  %991 = vmatprep.subr.mxu0 0.0
  %992 = vmatpush1.msra.mxu0 0.0
  %993 = vmatprep.subr.mxu0 0.0
  %994 = vmatpush1.msra.mxu0 0.0
  %995 = vmatprep.subr.mxu0 0.0
  %996 = vmatpush1.msra.mxu0 0.0
  %997 = vmatprep.subr.mxu0 0.0
  %998 = vmatpush1.msra.mxu0 0.0
  %999 = vmatprep.subr.mxu0 0.0
  %1000 = vmatpush1.msra.mxu0 0.0
  %1001 = vmatprep.subr.mxu0 0.0
  %1002 = vmatpush1.msra.mxu0 0.0
  %1003 = vmatprep.subr.mxu0 0.0
  %1004 = vmatpush1.msra.mxu0 0.0
  %1005 = vmatprep.subr.mxu0 0.0
  %1006 = vmatpush1.msra.mxu0 0.0
  %1007 = vmatprep.subr.mxu0 0.0
  %1008 = vmatpush1.msra.mxu0 0.0
  %1009 = vmatprep.subr.mxu0 0.0
  %1010 = vmatpush1.msra.mxu0 0.0
  %1011 = vmatprep.subr.mxu0 0.0
  %1012 = vmatpush1.msra.mxu0 0.0
  %1013 = vmatprep.subr.mxu0 0.0
  %1014 = vmatpush1.msra.mxu0 0.0
  %1015 = vmatprep.subr.mxu0 0.0
  %1016 = vmatpush1.msra.mxu0 0.0
  %1017 = vmatprep.subr.mxu0 0.0
  %1018 = vmatpush1.msra.mxu0 0.0
  %1019 = vmatprep.subr.mxu0 0.0
  %1020 = vmatpush1.msra.mxu0 0.0
  %1021 = vmatprep.subr.mxu0 0.0
  %1022 = vmatpush1.msra.mxu0 0.0
  %1023 = vmatprep.subr.mxu0 0.0
  %1024 = vmatpush1.msra.mxu0 0.0
  %1025 = vmatprep.mubr.f32.mxu0 0.0
  %1026 = vmatmul.mubr.f32.gmra.mrb[0].mxu0 %v493
  %v1027 = vpop.f32.mrb[0].mxu0
  %v1028 = vadd.f32 0.0, %v1027
  %v1029 = vpop.f32.mrb[0].mxu0
  %v1030 = vadd.f32 0.0, %v1029
  %1031 = vdwg.mxu0
  %v1032 = vadd.f32 %v957, %v1028
  %v1033 = vxor.u32 %v1032, 2147483648
  %v1034 = vmul.f32 %v1033, 1.442695
  %v1035 = vpow.pop %v1034
  %v1036 = vadd.f32 %v1035, 1.0
  %v1037 = vrcp.pop %v1036
  %v1038 = vmul.f32 1.0, %v1037
  %v1039 = vadd.f32 %v1030, %v152
  %v1040 = vmul.f32 %v1038, %v1039
  %v1041 = vadd.f32 %v959, %v1040
  %v1042 = vtanh.pop %v1041
  %v1043 = vsub.f32 1.0, %v1038
  %1045 = vrot.lane.b32.xlu0 %v1042, 64
  %v1046 = vpop.permute.xlu0 %1045
  %v1048 = vmul.f32 %v1043, %v1046
  %v1049 = vmul.f32 %v1038, %v489
  %v1050 = vadd.f32 %v1048, %v1049
  %1052 = vrot.lane.b32.xlu0 %v1050, 64
  %v1053 = vpop.permute.xlu0 %1052
  %v1054 = vsel %vm396, %v1053, 0
  %1056 = vmatprep.subr.mxu0 %v76
  %1057 = vmatpush1.msra.mxu0 %v75
  %1058 = vmatprep.subr.mxu0 %v78
  %1059 = vmatpush1.msra.mxu0 %v77
  %1060 = vmatprep.subr.mxu0 %v80
  %1061 = vmatpush1.msra.mxu0 %v79
  %1062 = vmatprep.subr.mxu0 %v82
  %1063 = vmatpush1.msra.mxu0 %v81
  %1064 = vmatprep.subr.mxu0 %v84
  %1065 = vmatpush1.msra.mxu0 %v83
  %1066 = vmatprep.subr.mxu0 %v86
  %1067 = vmatpush1.msra.mxu0 %v85
  %1068 = vmatprep.subr.mxu0 %v88
  %1069 = vmatpush1.msra.mxu0 %v87
  %1070 = vmatprep.subr.mxu0 %v90
  %1071 = vmatpush1.msra.mxu0 %v89
  %1072 = vmatprep.subr.mxu0 0.0
  %1073 = vmatpush1.msra.mxu0 0.0
  %1074 = vmatprep.subr.mxu0 0.0
  %1075 = vmatpush1.msra.mxu0 0.0
  %1076 = vmatprep.subr.mxu0 0.0
  %1077 = vmatpush1.msra.mxu0 0.0
  %1078 = vmatprep.subr.mxu0 0.0
  %1079 = vmatpush1.msra.mxu0 0.0
  %1080 = vmatprep.subr.mxu0 0.0
  %1081 = vmatpush1.msra.mxu0 0.0
  %1082 = vmatprep.subr.mxu0 0.0
  %1083 = vmatpush1.msra.mxu0 0.0
  %1084 = vmatprep.subr.mxu0 0.0
  %1085 = vmatpush1.msra.mxu0 0.0
  %1086 = vmatprep.subr.mxu0 0.0
  %1087 = vmatpush1.msra.mxu0 0.0
  %1088 = vmatprep.subr.mxu0 0.0
  %1089 = vmatpush1.msra.mxu0 0.0
  %1090 = vmatprep.subr.mxu0 0.0
  %1091 = vmatpush1.msra.mxu0 0.0
  %1092 = vmatprep.subr.mxu0 0.0
  %1093 = vmatpush1.msra.mxu0 0.0
  %1094 = vmatprep.subr.mxu0 0.0
  %1095 = vmatpush1.msra.mxu0 0.0
  %1096 = vmatprep.subr.mxu0 0.0
  %1097 = vmatpush1.msra.mxu0 0.0
  %1098 = vmatprep.subr.mxu0 0.0
  %1099 = vmatpush1.msra.mxu0 0.0
  %1100 = vmatprep.subr.mxu0 0.0
  %1101 = vmatpush1.msra.mxu0 0.0
  %1102 = vmatprep.subr.mxu0 0.0
  %1103 = vmatpush1.msra.mxu0 0.0
  %1104 = vmatprep.subr.mxu0 0.0
  %1105 = vmatpush1.msra.mxu0 0.0
  %1106 = vmatprep.subr.mxu0 0.0
  %1107 = vmatpush1.msra.mxu0 0.0
  %1108 = vmatprep.subr.mxu0 0.0
  %1109 = vmatpush1.msra.mxu0 0.0
  %1110 = vmatprep.subr.mxu0 0.0
  %1111 = vmatpush1.msra.mxu0 0.0
  %1112 = vmatprep.subr.mxu0 0.0
  %1113 = vmatpush1.msra.mxu0 0.0
  %1114 = vmatprep.subr.mxu0 0.0
  %1115 = vmatpush1.msra.mxu0 0.0
  %1116 = vmatprep.subr.mxu0 0.0
  %1117 = vmatpush1.msra.mxu0 0.0
  %1118 = vmatprep.subr.mxu0 0.0
  %1119 = vmatpush1.msra.mxu0 0.0
  %1120 = vmatprep.mubr.f32.mxu0 0.0
  %1121 = vmatmul.mubr.f32.gmra.mrb[0].mxu0 %v1054
  %v1122 = vpop.f32.mrb[0].mxu0
  %v1123 = vadd.f32 %v140, %v1122
  %v1124 = vpop.f32.mrb[0].mxu0
  %v1125 = vadd.f32 %v144, %v1124
  %1126 = vdwg.mxu0
  %1127 = vmatprep.subr.mxu0 %v92
  %1128 = vmatpush1.msra.mxu0 %v91
  %1129 = vmatprep.subr.mxu0 %v94
  %1130 = vmatpush1.msra.mxu0 %v93
  %1131 = vmatprep.subr.mxu0 %v96
  %1132 = vmatpush1.msra.mxu0 %v95
  %1133 = vmatprep.subr.mxu0 %v98
  %1134 = vmatpush1.msra.mxu0 %v97
  %1135 = vmatprep.subr.mxu0 %v100
  %1136 = vmatpush1.msra.mxu0 %v99
  %1137 = vmatprep.subr.mxu0 %v102
  %1138 = vmatpush1.msra.mxu0 %v101
  %1139 = vmatprep.subr.mxu0 %v104
  %1140 = vmatpush1.msra.mxu0 %v103
  %1141 = vmatprep.subr.mxu0 %v106
  %1142 = vmatpush1.msra.mxu0 %v105
  %1143 = vmatprep.subr.mxu0 0.0
  %1144 = vmatpush1.msra.mxu0 0.0
  %1145 = vmatprep.subr.mxu0 0.0
  %1146 = vmatpush1.msra.mxu0 0.0
  %1147 = vmatprep.subr.mxu0 0.0
  %1148 = vmatpush1.msra.mxu0 0.0
  %1149 = vmatprep.subr.mxu0 0.0
  %1150 = vmatpush1.msra.mxu0 0.0
  %1151 = vmatprep.subr.mxu0 0.0
  %1152 = vmatpush1.msra.mxu0 0.0
  %1153 = vmatprep.subr.mxu0 0.0
  %1154 = vmatpush1.msra.mxu0 0.0
  %1155 = vmatprep.subr.mxu0 0.0
  %1156 = vmatpush1.msra.mxu0 0.0
  %1157 = vmatprep.subr.mxu0 0.0
  %1158 = vmatpush1.msra.mxu0 0.0
  %1159 = vmatprep.subr.mxu0 0.0
  %1160 = vmatpush1.msra.mxu0 0.0
  %1161 = vmatprep.subr.mxu0 0.0
  %1162 = vmatpush1.msra.mxu0 0.0
  %1163 = vmatprep.subr.mxu0 0.0
  %1164 = vmatpush1.msra.mxu0 0.0
  %1165 = vmatprep.subr.mxu0 0.0
  %1166 = vmatpush1.msra.mxu0 0.0
  %1167 = vmatprep.subr.mxu0 0.0
  %1168 = vmatpush1.msra.mxu0 0.0
  %1169 = vmatprep.subr.mxu0 0.0
  %1170 = vmatpush1.msra.mxu0 0.0
  %1171 = vmatprep.subr.mxu0 0.0
  %1172 = vmatpush1.msra.mxu0 0.0
  %1173 = vmatprep.subr.mxu0 0.0
  %1174 = vmatpush1.msra.mxu0 0.0
  %1175 = vmatprep.subr.mxu0 0.0
  %1176 = vmatpush1.msra.mxu0 0.0
  %1177 = vmatprep.subr.mxu0 0.0
  %1178 = vmatpush1.msra.mxu0 0.0
  %1179 = vmatprep.subr.mxu0 0.0
  %1180 = vmatpush1.msra.mxu0 0.0
  %1181 = vmatprep.subr.mxu0 0.0
  %1182 = vmatpush1.msra.mxu0 0.0
  %1183 = vmatprep.subr.mxu0 0.0
  %1184 = vmatpush1.msra.mxu0 0.0
  %1185 = vmatprep.subr.mxu0 0.0
  %1186 = vmatpush1.msra.mxu0 0.0
  %1187 = vmatprep.subr.mxu0 0.0
  %1188 = vmatpush1.msra.mxu0 0.0
  %1189 = vmatprep.subr.mxu0 0.0
  %1190 = vmatpush1.msra.mxu0 0.0
  %1191 = vmatprep.mubr.f32.mxu0 0.0
  %1192 = vmatmul.mubr.f32.gmra.mrb[0].mxu0 %v659
  %v1193 = vpop.f32.mrb[0].mxu0
  %v1194 = vadd.f32 0.0, %v1193
  %v1195 = vpop.f32.mrb[0].mxu0
  %v1196 = vadd.f32 0.0, %v1195
  %1197 = vdwg.mxu0
  %v1198 = vadd.f32 %v1123, %v1194
  %v1199 = vxor.u32 %v1198, 2147483648
  %v1200 = vmul.f32 %v1199, 1.442695
  %v1201 = vpow.pop %v1200
  %v1202 = vadd.f32 %v1201, 1.0
  %v1203 = vrcp.pop %v1202
  %v1204 = vmul.f32 1.0, %v1203
  %v1205 = vadd.f32 %v1196, %v159
  %v1206 = vmul.f32 %v1204, %v1205
  %v1207 = vadd.f32 %v1125, %v1206
  %v1208 = vtanh.pop %v1207
  %v1209 = vsub.f32 1.0, %v1204
  %1211 = vrot.lane.b32.xlu0 %v1208, 64
  %v1212 = vpop.permute.xlu0 %1211
  %v1214 = vmul.f32 %v1209, %v1212
  %v1215 = vmul.f32 %v1204, %v655
  %v1216 = vadd.f32 %v1214, %v1215
  %1218 = vrot.lane.b32.xlu0 %v1216, 64
  %v1219 = vpop.permute.xlu0 %1218
  %v1220 = vsel %vm396, %v1219, 0
  %1222 = vmatprep.subr.mxu0 0.0
  %1223 = vmatpush1.msra.mxu0 %v115
  %1224 = vmatprep.subr.mxu0 0.0
  %1225 = vmatpush1.msra.mxu0 %v116
  %1226 = vmatprep.subr.mxu0 0.0
  %1227 = vmatpush1.msra.mxu0 %v117
  %1228 = vmatprep.subr.mxu0 0.0
  %1229 = vmatpush1.msra.mxu0 %v118
  %1230 = vmatprep.subr.mxu0 0.0
  %1231 = vmatpush1.msra.mxu0 %v119
  %1232 = vmatprep.subr.mxu0 0.0
  %1233 = vmatpush1.msra.mxu0 %v120
  %1234 = vmatprep.subr.mxu0 0.0
  %1235 = vmatpush1.msra.mxu0 %v121
  %1236 = vmatprep.subr.mxu0 0.0
  %1237 = vmatpush1.msra.mxu0 %v122
  %1238 = vmatprep.subr.mxu0 0.0
  %1239 = vmatpush1.msra.mxu0 0.0
  %1240 = vmatprep.subr.mxu0 0.0
  %1241 = vmatpush1.msra.mxu0 0.0
  %1242 = vmatprep.subr.mxu0 0.0
  %1243 = vmatpush1.msra.mxu0 0.0
  %1244 = vmatprep.subr.mxu0 0.0
  %1245 = vmatpush1.msra.mxu0 0.0
  %1246 = vmatprep.subr.mxu0 0.0
  %1247 = vmatpush1.msra.mxu0 0.0
  %1248 = vmatprep.subr.mxu0 0.0
  %1249 = vmatpush1.msra.mxu0 0.0
  %1250 = vmatprep.subr.mxu0 0.0
  %1251 = vmatpush1.msra.mxu0 0.0
  %1252 = vmatprep.subr.mxu0 0.0
  %1253 = vmatpush1.msra.mxu0 0.0
  %1254 = vmatprep.subr.mxu0 0.0
  %1255 = vmatpush1.msra.mxu0 0.0
  %1256 = vmatprep.subr.mxu0 0.0
  %1257 = vmatpush1.msra.mxu0 0.0
  %1258 = vmatprep.subr.mxu0 0.0
  %1259 = vmatpush1.msra.mxu0 0.0
  %1260 = vmatprep.subr.mxu0 0.0
  %1261 = vmatpush1.msra.mxu0 0.0
  %1262 = vmatprep.subr.mxu0 0.0
  %1263 = vmatpush1.msra.mxu0 0.0
  %1264 = vmatprep.subr.mxu0 0.0
  %1265 = vmatpush1.msra.mxu0 0.0
  %1266 = vmatprep.subr.mxu0 0.0
  %1267 = vmatpush1.msra.mxu0 0.0
  %1268 = vmatprep.subr.mxu0 0.0
  %1269 = vmatpush1.msra.mxu0 0.0
  %1270 = vmatprep.subr.mxu0 0.0
  %1271 = vmatpush1.msra.mxu0 0.0
  %1272 = vmatprep.subr.mxu0 0.0
  %1273 = vmatpush1.msra.mxu0 0.0
  %1274 = vmatprep.subr.mxu0 0.0
  %1275 = vmatpush1.msra.mxu0 0.0
  %1276 = vmatprep.subr.mxu0 0.0
  %1277 = vmatpush1.msra.mxu0 0.0
  %1278 = vmatprep.subr.mxu0 0.0
  %1279 = vmatpush1.msra.mxu0 0.0
  %1280 = vmatprep.subr.mxu0 0.0
  %1281 = vmatpush1.msra.mxu0 0.0
  %1282 = vmatprep.subr.mxu0 0.0
  %1283 = vmatpush1.msra.mxu0 0.0
  %1284 = vmatprep.subr.mxu0 0.0
  %1285 = vmatpush1.msra.mxu0 0.0
  %1286 = vmatprep.mubr.f32.mxu0 0.0
  %1287 = vmatmul.mubr.f32.gmra.mrb[0].mxu0 %v1220
  %v1288 = vpop.f32.mrb[0].mxu0
  %v1289 = vadd.f32 %v166, %v1288
  %v1290 = vpop.f32.mrb[0].mxu0
  %1291 = vdwg.mxu0
  %v1292 = vxor.u32 %v1289, 2147483648
  %v1293 = vmul.f32 %v1292, 1.442695
  %v1294 = vpow.pop %v1293
  %v1295 = vadd.f32 %v1294, 1.0
  %v1296 = vrcp.pop %v1295
  %v1297 = vmul.f32 1.0, %v1296
  %v1298 = vmul.f32 %v1297, %v889
  %v1299 = vadd.f32 %v885, %v1298
  %s1300 = scalar_lea.vmem %s14, 8
  %1301 = vst [vmem:[%s1300] sm:$0xff] %v1299
  // Predicated region
  $region58: #{wavelet_mask_forward.1} parent=0 // pred_check
    _
  $region59: #{wavelet_mask_forward.1} parent=0 // pred_check_branch
    %1303 = sbr.rel (0) target = $region61
  $region60: #{wavelet_mask_forward.1} parent=0 // pred_region
    _
  $region61: #{wavelet_mask_forward.1} parent=0 // pred_fallthru
    _
  // Predicated region
  $region62: #{wavelet_mask_forward.1} parent=0 // pred_check
    _
  $region63: #{wavelet_mask_forward.1} parent=0 // pred_check_branch
    %1305 = sbr.rel (0) target = $region65
  $region64: #{wavelet_mask_forward.1} parent=0 // pred_region
    _
  $region65: #{wavelet_mask_forward.1} parent=0 // pred_fallthru
    _

</llo_original>
